<compile_context>
chip_gen: v7x
topology: tpu7x:2x2x1
jax: 0.10.0
libtpu: 0.0.40
codegen_flags: <defaults>
</compile_context>

<pallas_src>
import jax
import jax.numpy as jnp
from jax.experimental import pallas as pl
from jax.experimental.pallas import tpu as pltpu


# ----------------------------------------------------------------------------
# Fused Pallas kernel: n_layers LSTM + FC head + output selection
# ----------------------------------------------------------------------------
def _make_fused_kernel(n_layers, seq_len, batch, hidden_dim, output_size):
    S, B, H, O = seq_len, batch, hidden_dim, output_size

    def kernel(x_ref, h0_ref, c0_ref, *refs):
        # refs layout:
        #   [w_ih_0, w_hh_0, b_0, ..., w_ih_{L-1}, w_hh_{L-1}, b_{L-1},
        #    fc_w, fc_b,  out_ref, state_ref, seq_scratch_0, seq_scratch_1]
        n_w = 3 * n_layers
        layer_refs = refs[:n_w]
        fc_w_ref, fc_b_ref = refs[n_w], refs[n_w + 1]
        out_ref, state_ref = refs[n_w + 2], refs[n_w + 3]
        seq_refs = refs[n_w + 4:]                      # 2 ping-pong VMEM slabs

        for l in range(n_layers):
            w_ih = layer_refs[3 * l][...]              # (E_in, 4H)  bf16
            w_hh = layer_refs[3 * l + 1][...]          # (H, 4H)     bf16
            b = layer_refs[3 * l + 2][...]             # (1, 4H)     f32

            # Layer input: time-major flattened slab, row (t*B + b), bf16.
            if l == 0:
                x_all = x_ref[...]                     # (S*B, E) bf16
            else:
                x_all = seq_refs[(l - 1) % 2][...].astype(jnp.bfloat16)

            # Hoisted (non-recurrent) input projection + fused bias: one big
            # matmul, off the serial per-step path.
            x_proj = jnp.dot(x_all, w_ih,
                             preferred_element_type=jnp.float32) + b   # (S*B, 4H) f32

            h = h0_ref[l]                              # (B, H) f32
            c = c0_ref[l]                              # (B, H) f32
            hs_out = seq_refs[l % 2]                   # this layer's hidden seq
            for t in range(S):                         # statically unrolled
                gates = x_proj[t * B:(t + 1) * B, :] + jnp.dot(
                    h.astype(jnp.bfloat16), w_hh,
                    preferred_element_type=jnp.float32)                 # (B, 4H)
                # Gate columns were reordered host-side to [i | f | o | g]:
                # one 3H-lane sigmoid + one H-lane tanh, no redundant EUP work.
                sg = jax.nn.sigmoid(gates[:, :3 * H])
                g_g = jnp.tanh(gates[:, 3 * H:])
                i_g = sg[:, 0 * H:1 * H]
                f_g = sg[:, 1 * H:2 * H]
                o_g = sg[:, 2 * H:3 * H]
                c = f_g * c + i_g * g_g
                h = o_g * jnp.tanh(c)
                # Per-step scratch write (bounds live ranges; no end-of-layer
                # concat). Dropout between layers is identity at inference.
                hs_out[pl.ds(t * B, B), :] = h

            # Packed final state slab: rows [l*B, (l+1)*B) = h_n of layer l,
            # rows [(n_layers+l)*B, ...) = c_n of layer l.
            state_ref[pl.ds(l * B, B), :] = h
            state_ref[pl.ds((n_layers + l) * B, B), :] = c

        # FC head: ONE matmul over the full last-layer (S*B, H) slab, then the
        # static picks implementing PyTorch `fc_out.view(B, O, -1)[:, :, -1]`:
        #   out[b, o] = fc(lstm_out[b, t_sel(o)])[c_sel(o)],
        #   flat = o*S + S-1, t_sel = flat // O, c_sel = flat % O  (static ints).
        hs_last = seq_refs[(n_layers - 1) % 2]
        fc_w = fc_w_ref[...]                           # (H, O) bf16
        fc_b = fc_b_ref[...]                           # (1, O) f32
        logits = jnp.dot(hs_last[...].astype(jnp.bfloat16), fc_w,
                         preferred_element_type=jnp.float32) + fc_b    # (S*B, O)
        cols = []
        for o in range(O):
            flat = o * S + (S - 1)
            t_sel, c_sel = flat // O, flat % O
            cols.append(logits[t_sel * B:(t_sel + 1) * B, c_sel:c_sel + 1])
        out_ref[...] = jnp.concatenate(cols, axis=-1)  # (B, O)

    return kernel


# ----------------------------------------------------------------------------
# Host-side weight prep: PyTorch layout -> kernel layout
# ----------------------------------------------------------------------------
def _prep_layer(w_ih, w_hh, b_ih, b_hh, H):
    # Reorder PyTorch gate blocks [i, f, g, o] -> [i, f, o, g] so the kernel
    # can use one contiguous 3H-lane sigmoid + one H-lane tanh.
    perm = jnp.array([0, 1, 3, 2], dtype=jnp.int32)

    def reorder_rows(w):
        return w.reshape(4, H, -1)[perm].reshape(4 * H, -1)

    w_ih_r = reorder_rows(w_ih)                                   # (4H, E_in)
    w_hh_r = reorder_rows(w_hh)                                   # (4H, H)
    bias = (b_ih + b_hh).reshape(4, H)[perm].reshape(1, 4 * H)    # fused bias
    return (w_ih_r.T.astype(jnp.bfloat16),                        # (E_in, 4H)
            w_hh_r.T.astype(jnp.bfloat16),                        # (H, 4H)
            bias.astype(jnp.float32))                             # (1, 4H)


# ----------------------------------------------------------------------------
# Wrapper
# ----------------------------------------------------------------------------
def lstm_multiclass_forward(params, x_tokens, hidden):
    """Reproduces LSTMMultiClass.forward (inference mode).

    x_tokens: (B, S) int32, hidden: (h0, c0) each (n_layers, B, H).
    Returns (out, (h_n, c_n)) with out: (B, output_size).
    """
    B, S = x_tokens.shape
    h0, c0 = hidden
    n_layers, _, H = h0.shape
    O = params["fc_w"].shape[0]

    # Embedding gather (data-dependent) stays in JAX glue and directly produces
    # the time-major flattened (S*B, E) bf16 slab the kernel consumes.
    # TODO(synk): a DMA-gather Pallas path is possible but unnecessary at this size.
    ids = x_tokens.T.reshape(-1)                              # row t*B + b = x[b, t]
    x_flat = jnp.take(params["embedding"], ids,
                      axis=0).astype(jnp.bfloat16)            # (S*B, E)

    args = [x_flat, h0.astype(jnp.float32), c0.astype(jnp.float32)]
    for l in range(n_layers):
        args += list(_prep_layer(params["w_ih"][l], params["w_hh"][l],
                                 params["b_ih"][l], params["b_hh"][l], H))
    args += [params["fc_w"].T.astype(jnp.bfloat16),           # (H, O)
             params["fc_b"].reshape(1, -1).astype(jnp.float32)]  # (1, O)

    kernel = _make_fused_kernel(n_layers, S, B, H, O)
    vmem = pltpu.MemorySpace.VMEM
    out, state = pl.pallas_call(
        kernel,
        out_shape=(jax.ShapeDtypeStruct((B, O), jnp.float32),
                   jax.ShapeDtypeStruct((2 * n_layers * B, H), jnp.float32)),
        in_specs=[pl.BlockSpec(memory_space=vmem) for _ in args],
        out_specs=(pl.BlockSpec(memory_space=vmem),
                   pl.BlockSpec(memory_space=vmem)),
        scratch_shapes=[pltpu.VMEM((S * B, H), jnp.float32),
                        pltpu.VMEM((S * B, H), jnp.float32)],
    )(*args)
    state = state.reshape(2, n_layers, B, H)
    return out, (state[0], state[1])


# ----------------------------------------------------------------------------
# Pure-JAX f32 reference (mirrors PyTorch semantics exactly)
# ----------------------------------------------------------------------------
def reference_forward(params, x_tokens, hidden):
    B, S = x_tokens.shape
    h0_all, c0_all = hidden
    n_layers = h0_all.shape[0]
    H = h0_all.shape[-1]
    O = params["fc_w"].shape[0]

    embeds = jnp.take(params["embedding"], x_tokens, axis=0)     # (B, S, E)
    layer_in = jnp.transpose(embeds, (1, 0, 2))                  # (S, B, E)
    hs, cs = [], []
    for l in range(n_layers):
        w_ih_t = params["w_ih"][l].T
        w_hh_t = params["w_hh"][l].T
        bias = params["b_ih"][l] + params["b_hh"][l]

        def step(carry, x_t, w_ih_t=w_ih_t, w_hh_t=w_hh_t, bias=bias):
            h, c = carry
            gates = x_t @ w_ih_t + h @ w_hh_t + bias
            i_g, f_g, g_g, o_g = jnp.split(gates, 4, axis=-1)
            i_g = jax.nn.sigmoid(i_g)
            f_g = jax.nn.sigmoid(f_g)
            g_g = jnp.tanh(g_g)
            o_g = jax.nn.sigmoid(o_g)
            c = f_g * c + i_g * g_g
            h = o_g * jnp.tanh(c)
            return (h, c), h

        (h_n, c_n), hseq = jax.lax.scan(step, (h0_all[l], c0_all[l]), layer_in)
        hs.append(h_n)
        cs.append(c_n)
        layer_in = hseq
    lstm_out = jnp.transpose(layer_in, (1, 0, 2))                # (B, S, H)
    flat = lstm_out.reshape(-1, H)
    fc_out = flat @ params["fc_w"].T + params["fc_b"]
    out = fc_out.reshape(B, O, -1)[:, :, -1]
    return out, (jnp.stack(hs, 0), jnp.stack(cs, 0))


# ----------------------------------------------------------------------------
# Main
# ----------------------------------------------------------------------------
if __name__ == "__main__":
    # Module hyperparameters (small, consistent with the forward pass).
    vocab_size = 50
    output_size = 4
    embedding_dim = 16
    hidden_dim = 32
    n_layers = 2
    batch = 2
    seq = 8

    key = jax.random.PRNGKey(0)
    ks = jax.random.split(key, 16)
    k_scale = 1.0 / (hidden_dim ** 0.5)

    # Deterministic synthetic parameters, PyTorch layout / init ranges.
    w_ih, w_hh, b_ih, b_hh = [], [], [], []
    for l in range(n_layers):
        in_dim = embedding_dim if l == 0 else hidden_dim
        w_ih.append(jax.random.uniform(ks[4 * l + 0], (4 * hidden_dim, in_dim),
                                       minval=-k_scale, maxval=k_scale,
                                       dtype=jnp.float32))
        w_hh.append(jax.random.uniform(ks[4 * l + 1], (4 * hidden_dim, hidden_dim),
                                       minval=-k_scale, maxval=k_scale,
                                       dtype=jnp.float32))
        b_ih.append(jax.random.uniform(ks[4 * l + 2], (4 * hidden_dim,),
                                       minval=-k_scale, maxval=k_scale,
                                       dtype=jnp.float32))
        b_hh.append(jax.random.uniform(ks[4 * l + 3], (4 * hidden_dim,),
                                       minval=-k_scale, maxval=k_scale,
                                       dtype=jnp.float32))

    params = {
        "embedding": jax.random.normal(ks[8], (vocab_size, embedding_dim),
                                       dtype=jnp.float32),
        "w_ih": w_ih,
        "w_hh": w_hh,
        "b_ih": b_ih,
        "b_hh": b_hh,
        "fc_w": jax.random.uniform(ks[9], (output_size, hidden_dim),
                                   minval=-k_scale, maxval=k_scale,
                                   dtype=jnp.float32),
        "fc_b": jax.random.uniform(ks[10], (output_size,),
                                   minval=-k_scale, maxval=k_scale,
                                   dtype=jnp.float32),
    }

    # Inputs: integer token ids and zero-initialized hidden state.
    x_tokens = jax.random.randint(ks[11], (batch, seq), 0, vocab_size,
                                  dtype=jnp.int32)
    hidden = (jnp.zeros((n_layers, batch, hidden_dim), jnp.float32),
              jnp.zeros((n_layers, batch, hidden_dim), jnp.float32))

    fwd = jax.jit(lstm_multiclass_forward)
    out, (h_n, c_n) = fwd(params, x_tokens, hidden)
    out = jax.block_until_ready(out)
    h_n = jax.block_until_ready(h_n)
    c_n = jax.block_until_ready(c_n)

    # Verify against the pure-JAX f32 reference (tolerance relaxed because the
    # kernel uses bf16 matmul operands with f32 accumulation).
    ref_out, (ref_h, ref_c) = reference_forward(params, x_tokens, hidden)
    assert out.shape == (batch, output_size)
    assert h_n.shape == (n_layers, batch, hidden_dim)
    assert c_n.shape == (n_layers, batch, hidden_dim)
    assert jnp.allclose(out, ref_out, atol=5e-2, rtol=5e-2)
    assert jnp.allclose(h_n, ref_h, atol=5e-2, rtol=5e-2)
    assert jnp.allclose(c_n, ref_c, atol=5e-2, rtol=5e-2)

    print("KERNEL_OK")
</pallas_src>

<mosaic_0001>
module attributes {stable_mosaic.version = 11 : i64} {
  func.func @kernel(%arg0: memref<16x16xbf16, #tpu.memory_space<vmem>>, %arg1: memref<2x2x32xf32, #tpu.memory_space<vmem>>, %arg2: memref<2x2x32xf32, #tpu.memory_space<vmem>>, %arg3: memref<16x128xbf16, #tpu.memory_space<vmem>>, %arg4: memref<32x128xbf16, #tpu.memory_space<vmem>>, %arg5: memref<1x128xf32, #tpu.memory_space<vmem>>, %arg6: memref<32x128xbf16, #tpu.memory_space<vmem>>, %arg7: memref<32x128xbf16, #tpu.memory_space<vmem>>, %arg8: memref<1x128xf32, #tpu.memory_space<vmem>>, %arg9: memref<32x4xbf16, #tpu.memory_space<vmem>>, %arg10: memref<1x4xf32, #tpu.memory_space<vmem>>, %arg11: memref<2x4xf32, #tpu.memory_space<vmem>>, %arg12: memref<8x32xf32, #tpu.memory_space<vmem>>, %arg13: memref<16x32xf32, #tpu.memory_space<vmem>>, %arg14: memref<16x32xf32, #tpu.memory_space<vmem>>) attributes {dimension_semantics = [], scalar_prefetch = 0 : i64, scratch_operands = 2 : i64, tpu.core_type = #tpu.core_type<tc>} {
    %c0 = arith.constant 0 : index
    %c0_0 = arith.constant 0 : index
    %0 = vector.load %arg3[%c0, %c0_0] : memref<16x128xbf16, #tpu.memory_space<vmem>>, vector<16x128xbf16>
    %c0_1 = arith.constant 0 : index
    %c0_2 = arith.constant 0 : index
    %1 = vector.load %arg4[%c0_1, %c0_2] : memref<32x128xbf16, #tpu.memory_space<vmem>>, vector<32x128xbf16>
    %c0_3 = arith.constant 0 : index
    %c0_4 = arith.constant 0 : index
    %2 = vector.load %arg5[%c0_3, %c0_4] : memref<1x128xf32, #tpu.memory_space<vmem>>, vector<1x128xf32>
    %c0_5 = arith.constant 0 : index
    %c0_6 = arith.constant 0 : index
    %3 = vector.load %arg0[%c0_5, %c0_6] : memref<16x16xbf16, #tpu.memory_space<vmem>>, vector<16x16xbf16>
    %cst = arith.constant dense<0.000000e+00> : vector<16x128xf32>
    %4 = tpu.matmul %3, %0, %cst {dimension_numbers = #tpu.dot_dimension_numbers<[1], [0], [0], [1], [0, 0, 1, 1], [], []>} : vector<16x16xbf16>, vector<16x128xbf16>, vector<16x128xf32> -> vector<16x128xf32>
    %5 = vector.broadcast %2 : vector<1x128xf32> to vector<16x128xf32>
    %6 = arith.addf %4, %5 : vector<16x128xf32>
    %c0_7 = arith.constant 0 : index
    %c0_8 = arith.constant 0 : index
    %c0_9 = arith.constant 0 : index
    %7 = vector.load %arg1[%c0_7, %c0_8, %c0_9] : memref<2x2x32xf32, #tpu.memory_space<vmem>>, vector<1x2x32xf32>
    %8 = vector.shape_cast %7 : vector<1x2x32xf32> to vector<2x32xf32>
    %c0_10 = arith.constant 0 : index
    %c0_11 = arith.constant 0 : index
    %c0_12 = arith.constant 0 : index
    %9 = vector.load %arg2[%c0_10, %c0_11, %c0_12] : memref<2x2x32xf32, #tpu.memory_space<vmem>>, vector<1x2x32xf32>
    %10 = vector.shape_cast %9 : vector<1x2x32xf32> to vector<2x32xf32>
    %11 = vector.extract_strided_slice %6 {offsets = [0, 0], sizes = [2, 128], strides = [1, 1]} : vector<16x128xf32> to vector<2x128xf32>
    %12 = arith.truncf %8 : vector<2x32xf32> to vector<2x32xbf16>
    %cst_13 = arith.constant dense<0.000000e+00> : vector<2x128xf32>
    %13 = tpu.matmul %12, %1, %cst_13 {dimension_numbers = #tpu.dot_dimension_numbers<[1], [0], [0], [1], [0, 0, 1, 1], [], []>} : vector<2x32xbf16>, vector<32x128xbf16>, vector<2x128xf32> -> vector<2x128xf32>
    %14 = arith.addf %11, %13 : vector<2x128xf32>
    %15 = vector.extract_strided_slice %14 {offsets = [0, 0], sizes = [2, 96], strides = [1, 1]} : vector<2x128xf32> to vector<2x96xf32>
    %16 = arith.negf %15 : vector<2x96xf32>
    %17 = math.exp %16 : vector<2x96xf32>
    %cst_14 = arith.constant 1.000000e+00 : f32
    %18 = vector.broadcast %cst_14 : f32 to vector<2x96xf32>
    %19 = arith.addf %18, %17 : vector<2x96xf32>
    %20 = arith.divf %18, %19 : vector<2x96xf32>
    %21 = vector.extract_strided_slice %14 {offsets = [0, 96], sizes = [2, 32], strides = [1, 1]} : vector<2x128xf32> to vector<2x32xf32>
    %22 = math.tanh %21 : vector<2x32xf32>
    %23 = vector.extract_strided_slice %20 {offsets = [0, 0], sizes = [2, 32], strides = [1, 1]} : vector<2x96xf32> to vector<2x32xf32>
    %24 = vector.extract_strided_slice %20 {offsets = [0, 32], sizes = [2, 32], strides = [1, 1]} : vector<2x96xf32> to vector<2x32xf32>
    %25 = vector.extract_strided_slice %20 {offsets = [0, 64], sizes = [2, 32], strides = [1, 1]} : vector<2x96xf32> to vector<2x32xf32>
    %26 = arith.mulf %24, %10 : vector<2x32xf32>
    %27 = arith.mulf %23, %22 : vector<2x32xf32>
    %28 = arith.addf %26, %27 : vector<2x32xf32>
    %29 = math.tanh %28 : vector<2x32xf32>
    %30 = arith.mulf %25, %29 : vector<2x32xf32>
    %c0_15 = arith.constant 0 : index
    %c0_16 = arith.constant 0 : index
    %31 = vector.load %arg13[%c0_15, %c0_16] : memref<16x32xf32, #tpu.memory_space<vmem>>, vector<2x32xf32>
    tpu.vector_store %arg13[%c0_15, %c0_16], %30 {strides = array<i32>} : memref<16x32xf32, #tpu.memory_space<vmem>>, vector<2x32xf32>,
    %32 = vector.extract_strided_slice %6 {offsets = [2, 0], sizes = [2, 128], strides = [1, 1]} : vector<16x128xf32> to vector<2x128xf32>
    %33 = arith.truncf %30 : vector<2x32xf32> to vector<2x32xbf16>
    %cst_17 = arith.constant dense<0.000000e+00> : vector<2x128xf32>
    %34 = tpu.matmul %33, %1, %cst_17 {dimension_numbers = #tpu.dot_dimension_numbers<[1], [0], [0], [1], [0, 0, 1, 1], [], []>} : vector<2x32xbf16>, vector<32x128xbf16>, vector<2x128xf32> -> vector<2x128xf32>
    %35 = arith.addf %32, %34 : vector<2x128xf32>
    %36 = vector.extract_strided_slice %35 {offsets = [0, 0], sizes = [2, 96], strides = [1, 1]} : vector<2x128xf32> to vector<2x96xf32>
    %37 = arith.negf %36 : vector<2x96xf32>
    %38 = math.exp %37 : vector<2x96xf32>
    %cst_18 = arith.constant 1.000000e+00 : f32
    %39 = vector.broadcast %cst_18 : f32 to vector<2x96xf32>
    %40 = arith.addf %39, %38 : vector<2x96xf32>
    %41 = arith.divf %39, %40 : vector<2x96xf32>
    %42 = vector.extract_strided_slice %35 {offsets = [0, 96], sizes = [2, 32], strides = [1, 1]} : vector<2x128xf32> to vector<2x32xf32>
    %43 = math.tanh %42 : vector<2x32xf32>
    %44 = vector.extract_strided_slice %41 {offsets = [0, 0], sizes = [2, 32], strides = [1, 1]} : vector<2x96xf32> to vector<2x32xf32>
    %45 = vector.extract_strided_slice %41 {offsets = [0, 32], sizes = [2, 32], strides = [1, 1]} : vector<2x96xf32> to vector<2x32xf32>
    %46 = vector.extract_strided_slice %41 {offsets = [0, 64], sizes = [2, 32], strides = [1, 1]} : vector<2x96xf32> to vector<2x32xf32>
    %47 = arith.mulf %45, %28 : vector<2x32xf32>
    %48 = arith.mulf %44, %43 : vector<2x32xf32>
    %49 = arith.addf %47, %48 : vector<2x32xf32>
    %50 = math.tanh %49 : vector<2x32xf32>
    %51 = arith.mulf %46, %50 : vector<2x32xf32>
    %c2 = arith.constant 2 : index
    %c0_19 = arith.constant 0 : index
    %52 = vector.load %arg13[%c2, %c0_19] : memref<16x32xf32, #tpu.memory_space<vmem>>, vector<2x32xf32>
    tpu.vector_store %arg13[%c2, %c0_19], %51 {strides = array<i32>} : memref<16x32xf32, #tpu.memory_space<vmem>>, vector<2x32xf32>,
    %53 = vector.extract_strided_slice %6 {offsets = [4, 0], sizes = [2, 128], strides = [1, 1]} : vector<16x128xf32> to vector<2x128xf32>
    %54 = arith.truncf %51 : vector<2x32xf32> to vector<2x32xbf16>
    %cst_20 = arith.constant dense<0.000000e+00> : vector<2x128xf32>
    %55 = tpu.matmul %54, %1, %cst_20 {dimension_numbers = #tpu.dot_dimension_numbers<[1], [0], [0], [1], [0, 0, 1, 1], [], []>} : vector<2x32xbf16>, vector<32x128xbf16>, vector<2x128xf32> -> vector<2x128xf32>
    %56 = arith.addf %53, %55 : vector<2x128xf32>
    %57 = vector.extract_strided_slice %56 {offsets = [0, 0], sizes = [2, 96], strides = [1, 1]} : vector<2x128xf32> to vector<2x96xf32>
    %58 = arith.negf %57 : vector<2x96xf32>
    %59 = math.exp %58 : vector<2x96xf32>
    %cst_21 = arith.constant 1.000000e+00 : f32
    %60 = vector.broadcast %cst_21 : f32 to vector<2x96xf32>
    %61 = arith.addf %60, %59 : vector<2x96xf32>
    %62 = arith.divf %60, %61 : vector<2x96xf32>
    %63 = vector.extract_strided_slice %56 {offsets = [0, 96], sizes = [2, 32], strides = [1, 1]} : vector<2x128xf32> to vector<2x32xf32>
    %64 = math.tanh %63 : vector<2x32xf32>
    %65 = vector.extract_strided_slice %62 {offsets = [0, 0], sizes = [2, 32], strides = [1, 1]} : vector<2x96xf32> to vector<2x32xf32>
    %66 = vector.extract_strided_slice %62 {offsets = [0, 32], sizes = [2, 32], strides = [1, 1]} : vector<2x96xf32> to vector<2x32xf32>
    %67 = vector.extract_strided_slice %62 {offsets = [0, 64], sizes = [2, 32], strides = [1, 1]} : vector<2x96xf32> to vector<2x32xf32>
    %68 = arith.mulf %66, %49 : vector<2x32xf32>
    %69 = arith.mulf %65, %64 : vector<2x32xf32>
    %70 = arith.addf %68, %69 : vector<2x32xf32>
    %71 = math.tanh %70 : vector<2x32xf32>
    %72 = arith.mulf %67, %71 : vector<2x32xf32>
    %c4 = arith.constant 4 : index
    %c0_22 = arith.constant 0 : index
    %73 = vector.load %arg13[%c4, %c0_22] : memref<16x32xf32, #tpu.memory_space<vmem>>, vector<2x32xf32>
    tpu.vector_store %arg13[%c4, %c0_22], %72 {strides = array<i32>} : memref<16x32xf32, #tpu.memory_space<vmem>>, vector<2x32xf32>,
    %74 = vector.extract_strided_slice %6 {offsets = [6, 0], sizes = [2, 128], strides = [1, 1]} : vector<16x128xf32> to vector<2x128xf32>
    %75 = arith.truncf %72 : vector<2x32xf32> to vector<2x32xbf16>
    %cst_23 = arith.constant dense<0.000000e+00> : vector<2x128xf32>
    %76 = tpu.matmul %75, %1, %cst_23 {dimension_numbers = #tpu.dot_dimension_numbers<[1], [0], [0], [1], [0, 0, 1, 1], [], []>} : vector<2x32xbf16>, vector<32x128xbf16>, vector<2x128xf32> -> vector<2x128xf32>
    %77 = arith.addf %74, %76 : vector<2x128xf32>
    %78 = vector.extract_strided_slice %77 {offsets = [0, 0], sizes = [2, 96], strides = [1, 1]} : vector<2x128xf32> to vector<2x96xf32>
    %79 = arith.negf %78 : vector<2x96xf32>
    %80 = math.exp %79 : vector<2x96xf32>
    %cst_24 = arith.constant 1.000000e+00 : f32
    %81 = vector.broadcast %cst_24 : f32 to vector<2x96xf32>
    %82 = arith.addf %81, %80 : vector<2x96xf32>
    %83 = arith.divf %81, %82 : vector<2x96xf32>
    %84 = vector.extract_strided_slice %77 {offsets = [0, 96], sizes = [2, 32], strides = [1, 1]} : vector<2x128xf32> to vector<2x32xf32>
    %85 = math.tanh %84 : vector<2x32xf32>
    %86 = vector.extract_strided_slice %83 {offsets = [0, 0], sizes = [2, 32], strides = [1, 1]} : vector<2x96xf32> to vector<2x32xf32>
    %87 = vector.extract_strided_slice %83 {offsets = [0, 32], sizes = [2, 32], strides = [1, 1]} : vector<2x96xf32> to vector<2x32xf32>
    %88 = vector.extract_strided_slice %83 {offsets = [0, 64], sizes = [2, 32], strides = [1, 1]} : vector<2x96xf32> to vector<2x32xf32>
    %89 = arith.mulf %87, %70 : vector<2x32xf32>
    %90 = arith.mulf %86, %85 : vector<2x32xf32>
    %91 = arith.addf %89, %90 : vector<2x32xf32>
    %92 = math.tanh %91 : vector<2x32xf32>
    %93 = arith.mulf %88, %92 : vector<2x32xf32>
    %c6 = arith.constant 6 : index
    %c0_25 = arith.constant 0 : index
    %94 = vector.load %arg13[%c6, %c0_25] : memref<16x32xf32, #tpu.memory_space<vmem>>, vector<2x32xf32>
    tpu.vector_store %arg13[%c6, %c0_25], %93 {strides = array<i32>} : memref<16x32xf32, #tpu.memory_space<vmem>>, vector<2x32xf32>,
    %95 = vector.extract_strided_slice %6 {offsets = [8, 0], sizes = [2, 128], strides = [1, 1]} : vector<16x128xf32> to vector<2x128xf32>
    %96 = arith.truncf %93 : vector<2x32xf32> to vector<2x32xbf16>
    %cst_26 = arith.constant dense<0.000000e+00> : vector<2x128xf32>
    %97 = tpu.matmul %96, %1, %cst_26 {dimension_numbers = #tpu.dot_dimension_numbers<[1], [0], [0], [1], [0, 0, 1, 1], [], []>} : vector<2x32xbf16>, vector<32x128xbf16>, vector<2x128xf32> -> vector<2x128xf32>
    %98 = arith.addf %95, %97 : vector<2x128xf32>
    %99 = vector.extract_strided_slice %98 {offsets = [0, 0], sizes = [2, 96], strides = [1, 1]} : vector<2x128xf32> to vector<2x96xf32>
    %100 = arith.negf %99 : vector<2x96xf32>
    %101 = math.exp %100 : vector<2x96xf32>
    %cst_27 = arith.constant 1.000000e+00 : f32
    %102 = vector.broadcast %cst_27 : f32 to vector<2x96xf32>
    %103 = arith.addf %102, %101 : vector<2x96xf32>
    %104 = arith.divf %102, %103 : vector<2x96xf32>
    %105 = vector.extract_strided_slice %98 {offsets = [0, 96], sizes = [2, 32], strides = [1, 1]} : vector<2x128xf32> to vector<2x32xf32>
    %106 = math.tanh %105 : vector<2x32xf32>
    %107 = vector.extract_strided_slice %104 {offsets = [0, 0], sizes = [2, 32], strides = [1, 1]} : vector<2x96xf32> to vector<2x32xf32>
    %108 = vector.extract_strided_slice %104 {offsets = [0, 32], sizes = [2, 32], strides = [1, 1]} : vector<2x96xf32> to vector<2x32xf32>
    %109 = vector.extract_strided_slice %104 {offsets = [0, 64], sizes = [2, 32], strides = [1, 1]} : vector<2x96xf32> to vector<2x32xf32>
    %110 = arith.mulf %108, %91 : vector<2x32xf32>
    %111 = arith.mulf %107, %106 : vector<2x32xf32>
    %112 = arith.addf %110, %111 : vector<2x32xf32>
    %113 = math.tanh %112 : vector<2x32xf32>
    %114 = arith.mulf %109, %113 : vector<2x32xf32>
    %c8 = arith.constant 8 : index
    %c0_28 = arith.constant 0 : index
    %115 = vector.load %arg13[%c8, %c0_28] : memref<16x32xf32, #tpu.memory_space<vmem>>, vector<2x32xf32>
    tpu.vector_store %arg13[%c8, %c0_28], %114 {strides = array<i32>} : memref<16x32xf32, #tpu.memory_space<vmem>>, vector<2x32xf32>,
    %116 = vector.extract_strided_slice %6 {offsets = [10, 0], sizes = [2, 128], strides = [1, 1]} : vector<16x128xf32> to vector<2x128xf32>
    %117 = arith.truncf %114 : vector<2x32xf32> to vector<2x32xbf16>
    %cst_29 = arith.constant dense<0.000000e+00> : vector<2x128xf32>
    %118 = tpu.matmul %117, %1, %cst_29 {dimension_numbers = #tpu.dot_dimension_numbers<[1], [0], [0], [1], [0, 0, 1, 1], [], []>} : vector<2x32xbf16>, vector<32x128xbf16>, vector<2x128xf32> -> vector<2x128xf32>
    %119 = arith.addf %116, %118 : vector<2x128xf32>
    %120 = vector.extract_strided_slice %119 {offsets = [0, 0], sizes = [2, 96], strides = [1, 1]} : vector<2x128xf32> to vector<2x96xf32>
    %121 = arith.negf %120 : vector<2x96xf32>
    %122 = math.exp %121 : vector<2x96xf32>
    %cst_30 = arith.constant 1.000000e+00 : f32
    %123 = vector.broadcast %cst_30 : f32 to vector<2x96xf32>
    %124 = arith.addf %123, %122 : vector<2x96xf32>
    %125 = arith.divf %123, %124 : vector<2x96xf32>
    %126 = vector.extract_strided_slice %119 {offsets = [0, 96], sizes = [2, 32], strides = [1, 1]} : vector<2x128xf32> to vector<2x32xf32>
    %127 = math.tanh %126 : vector<2x32xf32>
    %128 = vector.extract_strided_slice %125 {offsets = [0, 0], sizes = [2, 32], strides = [1, 1]} : vector<2x96xf32> to vector<2x32xf32>
    %129 = vector.extract_strided_slice %125 {offsets = [0, 32], sizes = [2, 32], strides = [1, 1]} : vector<2x96xf32> to vector<2x32xf32>
    %130 = vector.extract_strided_slice %125 {offsets = [0, 64], sizes = [2, 32], strides = [1, 1]} : vector<2x96xf32> to vector<2x32xf32>
    %131 = arith.mulf %129, %112 : vector<2x32xf32>
    %132 = arith.mulf %128, %127 : vector<2x32xf32>
    %133 = arith.addf %131, %132 : vector<2x32xf32>
    %134 = math.tanh %133 : vector<2x32xf32>
    %135 = arith.mulf %130, %134 : vector<2x32xf32>
    %c10 = arith.constant 10 : index
    %c0_31 = arith.constant 0 : index
    %136 = vector.load %arg13[%c10, %c0_31] : memref<16x32xf32, #tpu.memory_space<vmem>>, vector<2x32xf32>
    tpu.vector_store %arg13[%c10, %c0_31], %135 {strides = array<i32>} : memref<16x32xf32, #tpu.memory_space<vmem>>, vector<2x32xf32>,
    %137 = vector.extract_strided_slice %6 {offsets = [12, 0], sizes = [2, 128], strides = [1, 1]} : vector<16x128xf32> to vector<2x128xf32>
    %138 = arith.truncf %135 : vector<2x32xf32> to vector<2x32xbf16>
    %cst_32 = arith.constant dense<0.000000e+00> : vector<2x128xf32>
    %139 = tpu.matmul %138, %1, %cst_32 {dimension_numbers = #tpu.dot_dimension_numbers<[1], [0], [0], [1], [0, 0, 1, 1], [], []>} : vector<2x32xbf16>, vector<32x128xbf16>, vector<2x128xf32> -> vector<2x128xf32>
    %140 = arith.addf %137, %139 : vector<2x128xf32>
    %141 = vector.extract_strided_slice %140 {offsets = [0, 0], sizes = [2, 96], strides = [1, 1]} : vector<2x128xf32> to vector<2x96xf32>
    %142 = arith.negf %141 : vector<2x96xf32>
    %143 = math.exp %142 : vector<2x96xf32>
    %cst_33 = arith.constant 1.000000e+00 : f32
    %144 = vector.broadcast %cst_33 : f32 to vector<2x96xf32>
    %145 = arith.addf %144, %143 : vector<2x96xf32>
    %146 = arith.divf %144, %145 : vector<2x96xf32>
    %147 = vector.extract_strided_slice %140 {offsets = [0, 96], sizes = [2, 32], strides = [1, 1]} : vector<2x128xf32> to vector<2x32xf32>
    %148 = math.tanh %147 : vector<2x32xf32>
    %149 = vector.extract_strided_slice %146 {offsets = [0, 0], sizes = [2, 32], strides = [1, 1]} : vector<2x96xf32> to vector<2x32xf32>
    %150 = vector.extract_strided_slice %146 {offsets = [0, 32], sizes = [2, 32], strides = [1, 1]} : vector<2x96xf32> to vector<2x32xf32>
    %151 = vector.extract_strided_slice %146 {offsets = [0, 64], sizes = [2, 32], strides = [1, 1]} : vector<2x96xf32> to vector<2x32xf32>
    %152 = arith.mulf %150, %133 : vector<2x32xf32>
    %153 = arith.mulf %149, %148 : vector<2x32xf32>
    %154 = arith.addf %152, %153 : vector<2x32xf32>
    %155 = math.tanh %154 : vector<2x32xf32>
    %156 = arith.mulf %151, %155 : vector<2x32xf32>
    %c12 = arith.constant 12 : index
    %c0_34 = arith.constant 0 : index
    %157 = vector.load %arg13[%c12, %c0_34] : memref<16x32xf32, #tpu.memory_space<vmem>>, vector<2x32xf32>
    tpu.vector_store %arg13[%c12, %c0_34], %156 {strides = array<i32>} : memref<16x32xf32, #tpu.memory_space<vmem>>, vector<2x32xf32>,
    %158 = vector.extract_strided_slice %6 {offsets = [14, 0], sizes = [2, 128], strides = [1, 1]} : vector<16x128xf32> to vector<2x128xf32>
    %159 = arith.truncf %156 : vector<2x32xf32> to vector<2x32xbf16>
    %cst_35 = arith.constant dense<0.000000e+00> : vector<2x128xf32>
    %160 = tpu.matmul %159, %1, %cst_35 {dimension_numbers = #tpu.dot_dimension_numbers<[1], [0], [0], [1], [0, 0, 1, 1], [], []>} : vector<2x32xbf16>, vector<32x128xbf16>, vector<2x128xf32> -> vector<2x128xf32>
    %161 = arith.addf %158, %160 : vector<2x128xf32>
    %162 = vector.extract_strided_slice %161 {offsets = [0, 0], sizes = [2, 96], strides = [1, 1]} : vector<2x128xf32> to vector<2x96xf32>
    %163 = arith.negf %162 : vector<2x96xf32>
    %164 = math.exp %163 : vector<2x96xf32>
    %cst_36 = arith.constant 1.000000e+00 : f32
    %165 = vector.broadcast %cst_36 : f32 to vector<2x96xf32>
    %166 = arith.addf %165, %164 : vector<2x96xf32>
    %167 = arith.divf %165, %166 : vector<2x96xf32>
    %168 = vector.extract_strided_slice %161 {offsets = [0, 96], sizes = [2, 32], strides = [1, 1]} : vector<2x128xf32> to vector<2x32xf32>
    %169 = math.tanh %168 : vector<2x32xf32>
    %170 = vector.extract_strided_slice %167 {offsets = [0, 0], sizes = [2, 32], strides = [1, 1]} : vector<2x96xf32> to vector<2x32xf32>
    %171 = vector.extract_strided_slice %167 {offsets = [0, 32], sizes = [2, 32], strides = [1, 1]} : vector<2x96xf32> to vector<2x32xf32>
    %172 = vector.extract_strided_slice %167 {offsets = [0, 64], sizes = [2, 32], strides = [1, 1]} : vector<2x96xf32> to vector<2x32xf32>
    %173 = arith.mulf %171, %154 : vector<2x32xf32>
    %174 = arith.mulf %170, %169 : vector<2x32xf32>
    %175 = arith.addf %173, %174 : vector<2x32xf32>
    %176 = math.tanh %175 : vector<2x32xf32>
    %177 = arith.mulf %172, %176 : vector<2x32xf32>
    %c14 = arith.constant 14 : index
    %c0_37 = arith.constant 0 : index
    %178 = vector.load %arg13[%c14, %c0_37] : memref<16x32xf32, #tpu.memory_space<vmem>>, vector<2x32xf32>
    tpu.vector_store %arg13[%c14, %c0_37], %177 {strides = array<i32>} : memref<16x32xf32, #tpu.memory_space<vmem>>, vector<2x32xf32>,
    %c0_38 = arith.constant 0 : index
    %c0_39 = arith.constant 0 : index
    %179 = vector.load %arg12[%c0_38, %c0_39] : memref<8x32xf32, #tpu.memory_space<vmem>>, vector<2x32xf32>
    tpu.vector_store %arg12[%c0_38, %c0_39], %177 {strides = array<i32>} : memref<8x32xf32, #tpu.memory_space<vmem>>, vector<2x32xf32>,
    %c4_40 = arith.constant 4 : index
    %c0_41 = arith.constant 0 : index
    %180 = vector.load %arg12[%c4_40, %c0_41] : memref<8x32xf32, #tpu.memory_space<vmem>>, vector<2x32xf32>
    tpu.vector_store %arg12[%c4_40, %c0_41], %175 {strides = array<i32>} : memref<8x32xf32, #tpu.memory_space<vmem>>, vector<2x32xf32>,
    %c0_42 = arith.constant 0 : index
    %c0_43 = arith.constant 0 : index
    %181 = vector.load %arg6[%c0_42, %c0_43] : memref<32x128xbf16, #tpu.memory_space<vmem>>, vector<32x128xbf16>
    %c0_44 = arith.constant 0 : index
    %c0_45 = arith.constant 0 : index
    %182 = vector.load %arg7[%c0_44, %c0_45] : memref<32x128xbf16, #tpu.memory_space<vmem>>, vector<32x128xbf16>
    %c0_46 = arith.constant 0 : index
    %c0_47 = arith.constant 0 : index
    %183 = vector.load %arg8[%c0_46, %c0_47] : memref<1x128xf32, #tpu.memory_space<vmem>>, vector<1x128xf32>
    %c0_48 = arith.constant 0 : index
    %c0_49 = arith.constant 0 : index
    %184 = vector.load %arg13[%c0_48, %c0_49] : memref<16x32xf32, #tpu.memory_space<vmem>>, vector<16x32xf32>
    %185 = arith.truncf %184 : vector<16x32xf32> to vector<16x32xbf16>
    %cst_50 = arith.constant dense<0.000000e+00> : vector<16x128xf32>
    %186 = tpu.matmul %185, %181, %cst_50 {dimension_numbers = #tpu.dot_dimension_numbers<[1], [0], [0], [1], [0, 0, 1, 1], [], []>} : vector<16x32xbf16>, vector<32x128xbf16>, vector<16x128xf32> -> vector<16x128xf32>
    %187 = vector.broadcast %183 : vector<1x128xf32> to vector<16x128xf32>
    %188 = arith.addf %186, %187 : vector<16x128xf32>
    %c1 = arith.constant 1 : index
    %c0_51 = arith.constant 0 : index
    %c0_52 = arith.constant 0 : index
    %189 = vector.load %arg1[%c1, %c0_51, %c0_52] : memref<2x2x32xf32, #tpu.memory_space<vmem>>, vector<1x2x32xf32>
    %190 = vector.shape_cast %189 : vector<1x2x32xf32> to vector<2x32xf32>
    %c1_53 = arith.constant 1 : index
    %c0_54 = arith.constant 0 : index
    %c0_55 = arith.constant 0 : index
    %191 = vector.load %arg2[%c1_53, %c0_54, %c0_55] : memref<2x2x32xf32, #tpu.memory_space<vmem>>, vector<1x2x32xf32>
    %192 = vector.shape_cast %191 : vector<1x2x32xf32> to vector<2x32xf32>
    %193 = vector.extract_strided_slice %188 {offsets = [0, 0], sizes = [2, 128], strides = [1, 1]} : vector<16x128xf32> to vector<2x128xf32>
    %194 = arith.truncf %190 : vector<2x32xf32> to vector<2x32xbf16>
    %cst_56 = arith.constant dense<0.000000e+00> : vector<2x128xf32>
    %195 = tpu.matmul %194, %182, %cst_56 {dimension_numbers = #tpu.dot_dimension_numbers<[1], [0], [0], [1], [0, 0, 1, 1], [], []>} : vector<2x32xbf16>, vector<32x128xbf16>, vector<2x128xf32> -> vector<2x128xf32>
    %196 = arith.addf %193, %195 : vector<2x128xf32>
    %197 = vector.extract_strided_slice %196 {offsets = [0, 0], sizes = [2, 96], strides = [1, 1]} : vector<2x128xf32> to vector<2x96xf32>
    %198 = arith.negf %197 : vector<2x96xf32>
    %199 = math.exp %198 : vector<2x96xf32>
    %cst_57 = arith.constant 1.000000e+00 : f32
    %200 = vector.broadcast %cst_57 : f32 to vector<2x96xf32>
    %201 = arith.addf %200, %199 : vector<2x96xf32>
    %202 = arith.divf %200, %201 : vector<2x96xf32>
    %203 = vector.extract_strided_slice %196 {offsets = [0, 96], sizes = [2, 32], strides = [1, 1]} : vector<2x128xf32> to vector<2x32xf32>
    %204 = math.tanh %203 : vector<2x32xf32>
    %205 = vector.extract_strided_slice %202 {offsets = [0, 0], sizes = [2, 32], strides = [1, 1]} : vector<2x96xf32> to vector<2x32xf32>
    %206 = vector.extract_strided_slice %202 {offsets = [0, 32], sizes = [2, 32], strides = [1, 1]} : vector<2x96xf32> to vector<2x32xf32>
    %207 = vector.extract_strided_slice %202 {offsets = [0, 64], sizes = [2, 32], strides = [1, 1]} : vector<2x96xf32> to vector<2x32xf32>
    %208 = arith.mulf %206, %192 : vector<2x32xf32>
    %209 = arith.mulf %205, %204 : vector<2x32xf32>
    %210 = arith.addf %208, %209 : vector<2x32xf32>
    %211 = math.tanh %210 : vector<2x32xf32>
    %212 = arith.mulf %207, %211 : vector<2x32xf32>
    %c0_58 = arith.constant 0 : index
    %c0_59 = arith.constant 0 : index
    %213 = vector.load %arg14[%c0_58, %c0_59] : memref<16x32xf32, #tpu.memory_space<vmem>>, vector<2x32xf32>
    tpu.vector_store %arg14[%c0_58, %c0_59], %212 {strides = array<i32>} : memref<16x32xf32, #tpu.memory_space<vmem>>, vector<2x32xf32>,
    %214 = vector.extract_strided_slice %188 {offsets = [2, 0], sizes = [2, 128], strides = [1, 1]} : vector<16x128xf32> to vector<2x128xf32>
    %215 = arith.truncf %212 : vector<2x32xf32> to vector<2x32xbf16>
    %cst_60 = arith.constant dense<0.000000e+00> : vector<2x128xf32>
    %216 = tpu.matmul %215, %182, %cst_60 {dimension_numbers = #tpu.dot_dimension_numbers<[1], [0], [0], [1], [0, 0, 1, 1], [], []>} : vector<2x32xbf16>, vector<32x128xbf16>, vector<2x128xf32> -> vector<2x128xf32>
    %217 = arith.addf %214, %216 : vector<2x128xf32>
    %218 = vector.extract_strided_slice %217 {offsets = [0, 0], sizes = [2, 96], strides = [1, 1]} : vector<2x128xf32> to vector<2x96xf32>
    %219 = arith.negf %218 : vector<2x96xf32>
    %220 = math.exp %219 : vector<2x96xf32>
    %cst_61 = arith.constant 1.000000e+00 : f32
    %221 = vector.broadcast %cst_61 : f32 to vector<2x96xf32>
    %222 = arith.addf %221, %220 : vector<2x96xf32>
    %223 = arith.divf %221, %222 : vector<2x96xf32>
    %224 = vector.extract_strided_slice %217 {offsets = [0, 96], sizes = [2, 32], strides = [1, 1]} : vector<2x128xf32> to vector<2x32xf32>
    %225 = math.tanh %224 : vector<2x32xf32>
    %226 = vector.extract_strided_slice %223 {offsets = [0, 0], sizes = [2, 32], strides = [1, 1]} : vector<2x96xf32> to vector<2x32xf32>
    %227 = vector.extract_strided_slice %223 {offsets = [0, 32], sizes = [2, 32], strides = [1, 1]} : vector<2x96xf32> to vector<2x32xf32>
    %228 = vector.extract_strided_slice %223 {offsets = [0, 64], sizes = [2, 32], strides = [1, 1]} : vector<2x96xf32> to vector<2x32xf32>
    %229 = arith.mulf %227, %210 : vector<2x32xf32>
    %230 = arith.mulf %226, %225 : vector<2x32xf32>
    %231 = arith.addf %229, %230 : vector<2x32xf32>
    %232 = math.tanh %231 : vector<2x32xf32>
    %233 = arith.mulf %228, %232 : vector<2x32xf32>
    %c2_62 = arith.constant 2 : index
    %c0_63 = arith.constant 0 : index
    %234 = vector.load %arg14[%c2_62, %c0_63] : memref<16x32xf32, #tpu.memory_space<vmem>>, vector<2x32xf32>
    tpu.vector_store %arg14[%c2_62, %c0_63], %233 {strides = array<i32>} : memref<16x32xf32, #tpu.memory_space<vmem>>, vector<2x32xf32>,
    %235 = vector.extract_strided_slice %188 {offsets = [4, 0], sizes = [2, 128], strides = [1, 1]} : vector<16x128xf32> to vector<2x128xf32>
    %236 = arith.truncf %233 : vector<2x32xf32> to vector<2x32xbf16>
    %cst_64 = arith.constant dense<0.000000e+00> : vector<2x128xf32>
    %237 = tpu.matmul %236, %182, %cst_64 {dimension_numbers = #tpu.dot_dimension_numbers<[1], [0], [0], [1], [0, 0, 1, 1], [], []>} : vector<2x32xbf16>, vector<32x128xbf16>, vector<2x128xf32> -> vector<2x128xf32>
    %238 = arith.addf %235, %237 : vector<2x128xf32>
    %239 = vector.extract_strided_slice %238 {offsets = [0, 0], sizes = [2, 96], strides = [1, 1]} : vector<2x128xf32> to vector<2x96xf32>
    %240 = arith.negf %239 : vector<2x96xf32>
    %241 = math.exp %240 : vector<2x96xf32>
    %cst_65 = arith.constant 1.000000e+00 : f32
    %242 = vector.broadcast %cst_65 : f32 to vector<2x96xf32>
    %243 = arith.addf %242, %241 : vector<2x96xf32>
    %244 = arith.divf %242, %243 : vector<2x96xf32>
    %245 = vector.extract_strided_slice %238 {offsets = [0, 96], sizes = [2, 32], strides = [1, 1]} : vector<2x128xf32> to vector<2x32xf32>
    %246 = math.tanh %245 : vector<2x32xf32>
    %247 = vector.extract_strided_slice %244 {offsets = [0, 0], sizes = [2, 32], strides = [1, 1]} : vector<2x96xf32> to vector<2x32xf32>
    %248 = vector.extract_strided_slice %244 {offsets = [0, 32], sizes = [2, 32], strides = [1, 1]} : vector<2x96xf32> to vector<2x32xf32>
    %249 = vector.extract_strided_slice %244 {offsets = [0, 64], sizes = [2, 32], strides = [1, 1]} : vector<2x96xf32> to vector<2x32xf32>
    %250 = arith.mulf %248, %231 : vector<2x32xf32>
    %251 = arith.mulf %247, %246 : vector<2x32xf32>
    %252 = arith.addf %250, %251 : vector<2x32xf32>
    %253 = math.tanh %252 : vector<2x32xf32>
    %254 = arith.mulf %249, %253 : vector<2x32xf32>
    %c4_66 = arith.constant 4 : index
    %c0_67 = arith.constant 0 : index
    %255 = vector.load %arg14[%c4_66, %c0_67] : memref<16x32xf32, #tpu.memory_space<vmem>>, vector<2x32xf32>
    tpu.vector_store %arg14[%c4_66, %c0_67], %254 {strides = array<i32>} : memref<16x32xf32, #tpu.memory_space<vmem>>, vector<2x32xf32>,
    %256 = vector.extract_strided_slice %188 {offsets = [6, 0], sizes = [2, 128], strides = [1, 1]} : vector<16x128xf32> to vector<2x128xf32>
    %257 = arith.truncf %254 : vector<2x32xf32> to vector<2x32xbf16>
    %cst_68 = arith.constant dense<0.000000e+00> : vector<2x128xf32>
    %258 = tpu.matmul %257, %182, %cst_68 {dimension_numbers = #tpu.dot_dimension_numbers<[1], [0], [0], [1], [0, 0, 1, 1], [], []>} : vector<2x32xbf16>, vector<32x128xbf16>, vector<2x128xf32> -> vector<2x128xf32>
    %259 = arith.addf %256, %258 : vector<2x128xf32>
    %260 = vector.extract_strided_slice %259 {offsets = [0, 0], sizes = [2, 96], strides = [1, 1]} : vector<2x128xf32> to vector<2x96xf32>
    %261 = arith.negf %260 : vector<2x96xf32>
    %262 = math.exp %261 : vector<2x96xf32>
    %cst_69 = arith.constant 1.000000e+00 : f32
    %263 = vector.broadcast %cst_69 : f32 to vector<2x96xf32>
    %264 = arith.addf %263, %262 : vector<2x96xf32>
    %265 = arith.divf %263, %264 : vector<2x96xf32>
    %266 = vector.extract_strided_slice %259 {offsets = [0, 96], sizes = [2, 32], strides = [1, 1]} : vector<2x128xf32> to vector<2x32xf32>
    %267 = math.tanh %266 : vector<2x32xf32>
    %268 = vector.extract_strided_slice %265 {offsets = [0, 0], sizes = [2, 32], strides = [1, 1]} : vector<2x96xf32> to vector<2x32xf32>
    %269 = vector.extract_strided_slice %265 {offsets = [0, 32], sizes = [2, 32], strides = [1, 1]} : vector<2x96xf32> to vector<2x32xf32>
    %270 = vector.extract_strided_slice %265 {offsets = [0, 64], sizes = [2, 32], strides = [1, 1]} : vector<2x96xf32> to vector<2x32xf32>
    %271 = arith.mulf %269, %252 : vector<2x32xf32>
    %272 = arith.mulf %268, %267 : vector<2x32xf32>
    %273 = arith.addf %271, %272 : vector<2x32xf32>
    %274 = math.tanh %273 : vector<2x32xf32>
    %275 = arith.mulf %270, %274 : vector<2x32xf32>
    %c6_70 = arith.constant 6 : index
    %c0_71 = arith.constant 0 : index
    %276 = vector.load %arg14[%c6_70, %c0_71] : memref<16x32xf32, #tpu.memory_space<vmem>>, vector<2x32xf32>
    tpu.vector_store %arg14[%c6_70, %c0_71], %275 {strides = array<i32>} : memref<16x32xf32, #tpu.memory_space<vmem>>, vector<2x32xf32>,
    %277 = vector.extract_strided_slice %188 {offsets = [8, 0], sizes = [2, 128], strides = [1, 1]} : vector<16x128xf32> to vector<2x128xf32>
    %278 = arith.truncf %275 : vector<2x32xf32> to vector<2x32xbf16>
    %cst_72 = arith.constant dense<0.000000e+00> : vector<2x128xf32>
    %279 = tpu.matmul %278, %182, %cst_72 {dimension_numbers = #tpu.dot_dimension_numbers<[1], [0], [0], [1], [0, 0, 1, 1], [], []>} : vector<2x32xbf16>, vector<32x128xbf16>, vector<2x128xf32> -> vector<2x128xf32>
    %280 = arith.addf %277, %279 : vector<2x128xf32>
    %281 = vector.extract_strided_slice %280 {offsets = [0, 0], sizes = [2, 96], strides = [1, 1]} : vector<2x128xf32> to vector<2x96xf32>
    %282 = arith.negf %281 : vector<2x96xf32>
    %283 = math.exp %282 : vector<2x96xf32>
    %cst_73 = arith.constant 1.000000e+00 : f32
    %284 = vector.broadcast %cst_73 : f32 to vector<2x96xf32>
    %285 = arith.addf %284, %283 : vector<2x96xf32>
    %286 = arith.divf %284, %285 : vector<2x96xf32>
    %287 = vector.extract_strided_slice %280 {offsets = [0, 96], sizes = [2, 32], strides = [1, 1]} : vector<2x128xf32> to vector<2x32xf32>
    %288 = math.tanh %287 : vector<2x32xf32>
    %289 = vector.extract_strided_slice %286 {offsets = [0, 0], sizes = [2, 32], strides = [1, 1]} : vector<2x96xf32> to vector<2x32xf32>
    %290 = vector.extract_strided_slice %286 {offsets = [0, 32], sizes = [2, 32], strides = [1, 1]} : vector<2x96xf32> to vector<2x32xf32>
    %291 = vector.extract_strided_slice %286 {offsets = [0, 64], sizes = [2, 32], strides = [1, 1]} : vector<2x96xf32> to vector<2x32xf32>
    %292 = arith.mulf %290, %273 : vector<2x32xf32>
    %293 = arith.mulf %289, %288 : vector<2x32xf32>
    %294 = arith.addf %292, %293 : vector<2x32xf32>
    %295 = math.tanh %294 : vector<2x32xf32>
    %296 = arith.mulf %291, %295 : vector<2x32xf32>
    %c8_74 = arith.constant 8 : index
    %c0_75 = arith.constant 0 : index
    %297 = vector.load %arg14[%c8_74, %c0_75] : memref<16x32xf32, #tpu.memory_space<vmem>>, vector<2x32xf32>
    tpu.vector_store %arg14[%c8_74, %c0_75], %296 {strides = array<i32>} : memref<16x32xf32, #tpu.memory_space<vmem>>, vector<2x32xf32>,
    %298 = vector.extract_strided_slice %188 {offsets = [10, 0], sizes = [2, 128], strides = [1, 1]} : vector<16x128xf32> to vector<2x128xf32>
    %299 = arith.truncf %296 : vector<2x32xf32> to vector<2x32xbf16>
    %cst_76 = arith.constant dense<0.000000e+00> : vector<2x128xf32>
    %300 = tpu.matmul %299, %182, %cst_76 {dimension_numbers = #tpu.dot_dimension_numbers<[1], [0], [0], [1], [0, 0, 1, 1], [], []>} : vector<2x32xbf16>, vector<32x128xbf16>, vector<2x128xf32> -> vector<2x128xf32>
    %301 = arith.addf %298, %300 : vector<2x128xf32>
    %302 = vector.extract_strided_slice %301 {offsets = [0, 0], sizes = [2, 96], strides = [1, 1]} : vector<2x128xf32> to vector<2x96xf32>
    %303 = arith.negf %302 : vector<2x96xf32>
    %304 = math.exp %303 : vector<2x96xf32>
    %cst_77 = arith.constant 1.000000e+00 : f32
    %305 = vector.broadcast %cst_77 : f32 to vector<2x96xf32>
    %306 = arith.addf %305, %304 : vector<2x96xf32>
    %307 = arith.divf %305, %306 : vector<2x96xf32>
    %308 = vector.extract_strided_slice %301 {offsets = [0, 96], sizes = [2, 32], strides = [1, 1]} : vector<2x128xf32> to vector<2x32xf32>
    %309 = math.tanh %308 : vector<2x32xf32>
    %310 = vector.extract_strided_slice %307 {offsets = [0, 0], sizes = [2, 32], strides = [1, 1]} : vector<2x96xf32> to vector<2x32xf32>
    %311 = vector.extract_strided_slice %307 {offsets = [0, 32], sizes = [2, 32], strides = [1, 1]} : vector<2x96xf32> to vector<2x32xf32>
    %312 = vector.extract_strided_slice %307 {offsets = [0, 64], sizes = [2, 32], strides = [1, 1]} : vector<2x96xf32> to vector<2x32xf32>
    %313 = arith.mulf %311, %294 : vector<2x32xf32>
    %314 = arith.mulf %310, %309 : vector<2x32xf32>
    %315 = arith.addf %313, %314 : vector<2x32xf32>
    %316 = math.tanh %315 : vector<2x32xf32>
    %317 = arith.mulf %312, %316 : vector<2x32xf32>
    %c10_78 = arith.constant 10 : index
    %c0_79 = arith.constant 0 : index
    %318 = vector.load %arg14[%c10_78, %c0_79] : memref<16x32xf32, #tpu.memory_space<vmem>>, vector<2x32xf32>
    tpu.vector_store %arg14[%c10_78, %c0_79], %317 {strides = array<i32>} : memref<16x32xf32, #tpu.memory_space<vmem>>, vector<2x32xf32>,
    %319 = vector.extract_strided_slice %188 {offsets = [12, 0], sizes = [2, 128], strides = [1, 1]} : vector<16x128xf32> to vector<2x128xf32>
    %320 = arith.truncf %317 : vector<2x32xf32> to vector<2x32xbf16>
    %cst_80 = arith.constant dense<0.000000e+00> : vector<2x128xf32>
    %321 = tpu.matmul %320, %182, %cst_80 {dimension_numbers = #tpu.dot_dimension_numbers<[1], [0], [0], [1], [0, 0, 1, 1], [], []>} : vector<2x32xbf16>, vector<32x128xbf16>, vector<2x128xf32> -> vector<2x128xf32>
    %322 = arith.addf %319, %321 : vector<2x128xf32>
    %323 = vector.extract_strided_slice %322 {offsets = [0, 0], sizes = [2, 96], strides = [1, 1]} : vector<2x128xf32> to vector<2x96xf32>
    %324 = arith.negf %323 : vector<2x96xf32>
    %325 = math.exp %324 : vector<2x96xf32>
    %cst_81 = arith.constant 1.000000e+00 : f32
    %326 = vector.broadcast %cst_81 : f32 to vector<2x96xf32>
    %327 = arith.addf %326, %325 : vector<2x96xf32>
    %328 = arith.divf %326, %327 : vector<2x96xf32>
    %329 = vector.extract_strided_slice %322 {offsets = [0, 96], sizes = [2, 32], strides = [1, 1]} : vector<2x128xf32> to vector<2x32xf32>
    %330 = math.tanh %329 : vector<2x32xf32>
    %331 = vector.extract_strided_slice %328 {offsets = [0, 0], sizes = [2, 32], strides = [1, 1]} : vector<2x96xf32> to vector<2x32xf32>
    %332 = vector.extract_strided_slice %328 {offsets = [0, 32], sizes = [2, 32], strides = [1, 1]} : vector<2x96xf32> to vector<2x32xf32>
    %333 = vector.extract_strided_slice %328 {offsets = [0, 64], sizes = [2, 32], strides = [1, 1]} : vector<2x96xf32> to vector<2x32xf32>
    %334 = arith.mulf %332, %315 : vector<2x32xf32>
    %335 = arith.mulf %331, %330 : vector<2x32xf32>
    %336 = arith.addf %334, %335 : vector<2x32xf32>
    %337 = math.tanh %336 : vector<2x32xf32>
    %338 = arith.mulf %333, %337 : vector<2x32xf32>
    %c12_82 = arith.constant 12 : index
    %c0_83 = arith.constant 0 : index
    %339 = vector.load %arg14[%c12_82, %c0_83] : memref<16x32xf32, #tpu.memory_space<vmem>>, vector<2x32xf32>
    tpu.vector_store %arg14[%c12_82, %c0_83], %338 {strides = array<i32>} : memref<16x32xf32, #tpu.memory_space<vmem>>, vector<2x32xf32>,
    %340 = vector.extract_strided_slice %188 {offsets = [14, 0], sizes = [2, 128], strides = [1, 1]} : vector<16x128xf32> to vector<2x128xf32>
    %341 = arith.truncf %338 : vector<2x32xf32> to vector<2x32xbf16>
    %cst_84 = arith.constant dense<0.000000e+00> : vector<2x128xf32>
    %342 = tpu.matmul %341, %182, %cst_84 {dimension_numbers = #tpu.dot_dimension_numbers<[1], [0], [0], [1], [0, 0, 1, 1], [], []>} : vector<2x32xbf16>, vector<32x128xbf16>, vector<2x128xf32> -> vector<2x128xf32>
    %343 = arith.addf %340, %342 : vector<2x128xf32>
    %344 = vector.extract_strided_slice %343 {offsets = [0, 0], sizes = [2, 96], strides = [1, 1]} : vector<2x128xf32> to vector<2x96xf32>
    %345 = arith.negf %344 : vector<2x96xf32>
    %346 = math.exp %345 : vector<2x96xf32>
    %cst_85 = arith.constant 1.000000e+00 : f32
    %347 = vector.broadcast %cst_85 : f32 to vector<2x96xf32>
    %348 = arith.addf %347, %346 : vector<2x96xf32>
    %349 = arith.divf %347, %348 : vector<2x96xf32>
    %350 = vector.extract_strided_slice %343 {offsets = [0, 96], sizes = [2, 32], strides = [1, 1]} : vector<2x128xf32> to vector<2x32xf32>
    %351 = math.tanh %350 : vector<2x32xf32>
    %352 = vector.extract_strided_slice %349 {offsets = [0, 0], sizes = [2, 32], strides = [1, 1]} : vector<2x96xf32> to vector<2x32xf32>
    %353 = vector.extract_strided_slice %349 {offsets = [0, 32], sizes = [2, 32], strides = [1, 1]} : vector<2x96xf32> to vector<2x32xf32>
    %354 = vector.extract_strided_slice %349 {offsets = [0, 64], sizes = [2, 32], strides = [1, 1]} : vector<2x96xf32> to vector<2x32xf32>
    %355 = arith.mulf %353, %336 : vector<2x32xf32>
    %356 = arith.mulf %352, %351 : vector<2x32xf32>
    %357 = arith.addf %355, %356 : vector<2x32xf32>
    %358 = math.tanh %357 : vector<2x32xf32>
    %359 = arith.mulf %354, %358 : vector<2x32xf32>
    %c14_86 = arith.constant 14 : index
    %c0_87 = arith.constant 0 : index
    %360 = vector.load %arg14[%c14_86, %c0_87] : memref<16x32xf32, #tpu.memory_space<vmem>>, vector<2x32xf32>
    tpu.vector_store %arg14[%c14_86, %c0_87], %359 {strides = array<i32>} : memref<16x32xf32, #tpu.memory_space<vmem>>, vector<2x32xf32>,
    %c2_88 = arith.constant 2 : index
    %c0_89 = arith.constant 0 : index
    %361 = vector.load %arg12[%c2_88, %c0_89] : memref<8x32xf32, #tpu.memory_space<vmem>>, vector<2x32xf32>
    tpu.vector_store %arg12[%c2_88, %c0_89], %359 {strides = array<i32>} : memref<8x32xf32, #tpu.memory_space<vmem>>, vector<2x32xf32>,
    %c6_90 = arith.constant 6 : index
    %c0_91 = arith.constant 0 : index
    %362 = vector.load %arg12[%c6_90, %c0_91] : memref<8x32xf32, #tpu.memory_space<vmem>>, vector<2x32xf32>
    tpu.vector_store %arg12[%c6_90, %c0_91], %357 {strides = array<i32>} : memref<8x32xf32, #tpu.memory_space<vmem>>, vector<2x32xf32>,
    %c0_92 = arith.constant 0 : index
    %c0_93 = arith.constant 0 : index
    %363 = vector.load %arg9[%c0_92, %c0_93] : memref<32x4xbf16, #tpu.memory_space<vmem>>, vector<32x4xbf16>
    %c0_94 = arith.constant 0 : index
    %c0_95 = arith.constant 0 : index
    %364 = vector.load %arg10[%c0_94, %c0_95] : memref<1x4xf32, #tpu.memory_space<vmem>>, vector<1x4xf32>
    %c0_96 = arith.constant 0 : index
    %c0_97 = arith.constant 0 : index
    %365 = vector.load %arg14[%c0_96, %c0_97] : memref<16x32xf32, #tpu.memory_space<vmem>>, vector<16x32xf32>
    %366 = arith.truncf %365 : vector<16x32xf32> to vector<16x32xbf16>
    %cst_98 = arith.constant dense<0.000000e+00> : vector<16x4xf32>
    %367 = tpu.matmul %366, %363, %cst_98 {dimension_numbers = #tpu.dot_dimension_numbers<[1], [0], [0], [1], [0, 0, 1, 1], [], []>} : vector<16x32xbf16>, vector<32x4xbf16>, vector<16x4xf32> -> vector<16x4xf32>
    %368 = vector.broadcast %364 : vector<1x4xf32> to vector<16x4xf32>
    %369 = arith.addf %367, %368 : vector<16x4xf32>
    %370 = vector.extract_strided_slice %369 {offsets = [2, 3], sizes = [2, 1], strides = [1, 1]} : vector<16x4xf32> to vector<2x1xf32>
    %371 = vector.extract_strided_slice %369 {offsets = [6, 3], sizes = [2, 1], strides = [1, 1]} : vector<16x4xf32> to vector<2x1xf32>
    %372 = vector.extract_strided_slice %369 {offsets = [10, 3], sizes = [2, 1], strides = [1, 1]} : vector<16x4xf32> to vector<2x1xf32>
    %373 = vector.extract_strided_slice %369 {offsets = [14, 3], sizes = [2, 1], strides = [1, 1]} : vector<16x4xf32> to vector<2x1xf32>
    %374 = tpu.concatenate %370, %371, %372, %373 in 1 : vector<2x1xf32>, vector<2x1xf32>, vector<2x1xf32>, vector<2x1xf32> -> vector<2x4xf32>
    %c0_99 = arith.constant 0 : index
    %c0_100 = arith.constant 0 : index
    %375 = vector.load %arg11[%c0_99, %c0_100] : memref<2x4xf32, #tpu.memory_space<vmem>>, vector<2x4xf32>
    tpu.vector_store %arg11[%c0_99, %c0_100], %374 {strides = array<i32>} : memref<2x4xf32, #tpu.memory_space<vmem>>, vector<2x4xf32>,
    return
  }
}

</mosaic_0001>

<llo_original>
// kernel: lstm_multiclass_forward.1
$region0: #{lstm_multiclass_forward.1}
  #allocation0 [shape = 'u32[]', space=smem, size = 0x4, offset = 0x4, fixed_abs, tag = 'smem constant byte address 0x4 - core index']
  #allocation1 [shape = 'u32[144,128]{1,0:T(1,128)}', space=vmem, size = 0x12000, scoped, tag = 'internal scratch']
  #allocation2 [shape = 'f32[16,32]{1,0:T(8,128)}', space=vmem, size = 0x2000, scoped, tag = 'scratch operand']
  #allocation3 [shape = 'f32[16,32]{1,0:T(8,128)}', space=vmem, size = 0x2000, scoped, tag = 'scratch operand']
  %s0 = inlined_call_operand.vmem [shape: bf16[16,16], index: 0, kind: input, shape index: {}]
  %s1 = inlined_call_operand.vmem [shape: f32[2,2,32], index: 1, kind: input, shape index: {}]
  %s2 = inlined_call_operand.vmem [shape: f32[2,2,32], index: 2, kind: input, shape index: {}]
  %s3 = inlined_call_operand.vmem [shape: bf16[16,128], index: 3, kind: input, shape index: {}]
  %s4 = inlined_call_operand.vmem [shape: bf16[32,128], index: 4, kind: input, shape index: {}]
  %s5 = inlined_call_operand.vmem [shape: f32[1,128], index: 5, kind: input, shape index: {}]
  %s6 = inlined_call_operand.vmem [shape: bf16[32,128], index: 6, kind: input, shape index: {}]
  %s7 = inlined_call_operand.vmem [shape: bf16[32,128], index: 7, kind: input, shape index: {}]
  %s8 = inlined_call_operand.vmem [shape: f32[1,128], index: 8, kind: input, shape index: {}]
  %s9 = inlined_call_operand.vmem [shape: bf16[32,4], index: 9, kind: input, shape index: {}]
  %s10 = inlined_call_operand.vmem [shape: f32[1,4], index: 10, kind: input, shape index: {}]
  %s11 = inlined_call_operand.hbm [shape: f32[2,4], index: 11, kind: output, shape index: {0}]
  %s12 = inlined_call_operand.vmem [shape: f32[8,32], index: 12, kind: output, shape index: {1}]
  %13 = xla_tuple %s11, %s12
  %s14 = sld [smem:[#allocation0]]
  $region62: #{lstm_multiclass_forward.1} parent=0
    _
  %s16 = ssub.s32 1, %s14
  %s17 = scalar_select 0, %s16, %s14
  $region1: #{lstm_multiclass_forward.1} parent=0
    #allocation4 [shape = 'u8[1024]{0}', space=vmem, size = 0x400, scoped, tag = 'output window, operand 0, single buffered']
    #allocation5 [shape = 's32[1]{0}', space=sflag, size = 0x4, scoped, tag = 'scoped memory for lstm_multiclass_forward.1']
    %18 = vsyncpa [#allocation5], 0
    // Predicated region
    $region2: #{lstm_multiclass_forward.1} parent=1 // pred_check
      _
    $region3: #{lstm_multiclass_forward.1} parent=1 // pred_check_branch
      %20 = sbr.rel (0) target = $region5
    $region4: #{lstm_multiclass_forward.1} parent=1 // pred_region
      _
    $region5: #{lstm_multiclass_forward.1} parent=1 // pred_fallthru
      _
    // Predicated region
    $region6: #{lstm_multiclass_forward.1} parent=1 // pred_check
      _
    $region7: #{lstm_multiclass_forward.1} parent=1 // pred_check_branch
      %22 = sbr.rel (0) target = $region9
    $region8: #{lstm_multiclass_forward.1} parent=1 // pred_region
      _
    $region9: #{lstm_multiclass_forward.1} parent=1 // pred_fallthru
      _
    // Predicated region
    $region10: #{lstm_multiclass_forward.1} parent=1 // pred_check
      _
    $region11: #{lstm_multiclass_forward.1} parent=1 // pred_check_branch
      %24 = sbr.rel (0) target = $region13
    $region12: #{lstm_multiclass_forward.1} parent=1 // pred_region
      _
    $region13: #{lstm_multiclass_forward.1} parent=1 // pred_fallthru
      _
    // Predicated region
    $region14: #{lstm_multiclass_forward.1} parent=1 // pred_check
      _
    $region15: #{lstm_multiclass_forward.1} parent=1 // pred_check_branch
      %26 = sbr.rel (0) target = $region17
    $region16: #{lstm_multiclass_forward.1} parent=1 // pred_region
      _
    $region17: #{lstm_multiclass_forward.1} parent=1 // pred_fallthru
      _
    // Predicated region
    $region18: #{lstm_multiclass_forward.1} parent=1 // pred_check
      _
    $region19: #{lstm_multiclass_forward.1} parent=1 // pred_check_branch
      %28 = sbr.rel (0) target = $region21
    $region20: #{lstm_multiclass_forward.1} parent=1 // pred_region
      _
    $region21: #{lstm_multiclass_forward.1} parent=1 // pred_fallthru
      _
    // Predicated region
    $region22: #{lstm_multiclass_forward.1} parent=1 // pred_check
      _
    $region23: #{lstm_multiclass_forward.1} parent=1 // pred_check_branch
      %30 = sbr.rel (0) target = $region25
    $region24: #{lstm_multiclass_forward.1} parent=1 // pred_region
      _
    $region25: #{lstm_multiclass_forward.1} parent=1 // pred_fallthru
      _
    // Predicated region
    $region26: #{lstm_multiclass_forward.1} parent=1 // pred_check
      _
    $region27: #{lstm_multiclass_forward.1} parent=1 // pred_check_branch
      %32 = sbr.rel (0) target = $region29
    $region28: #{lstm_multiclass_forward.1} parent=1 // pred_region
      _
    $region29: #{lstm_multiclass_forward.1} parent=1 // pred_fallthru
      _
    // Predicated region
    $region30: #{lstm_multiclass_forward.1} parent=1 // pred_check
      _
    $region31: #{lstm_multiclass_forward.1} parent=1 // pred_check_branch
      %34 = sbr.rel (0) target = $region33
    $region32: #{lstm_multiclass_forward.1} parent=1 // pred_region
      _
    $region33: #{lstm_multiclass_forward.1} parent=1 // pred_fallthru
      _
    // Predicated region
    $region34: #{lstm_multiclass_forward.1} parent=1 // pred_check
      _
    $region35: #{lstm_multiclass_forward.1} parent=1 // pred_check_branch
      %36 = sbr.rel (0) target = $region37
    $region36: #{lstm_multiclass_forward.1} parent=1 // pred_region
      _
    $region37: #{lstm_multiclass_forward.1} parent=1 // pred_fallthru
      _
    // Predicated region
    $region38: #{lstm_multiclass_forward.1} parent=1 // pred_check
      _
    $region39: #{lstm_multiclass_forward.1} parent=1 // pred_check_branch
      %38 = sbr.rel (0) target = $region41
    $region40: #{lstm_multiclass_forward.1} parent=1 // pred_region
      _
    $region41: #{lstm_multiclass_forward.1} parent=1 // pred_fallthru
      _
    // Predicated region
    $region42: #{lstm_multiclass_forward.1} parent=1 // pred_check
      _
    $region43: #{lstm_multiclass_forward.1} parent=1 // pred_check_branch
      %40 = sbr.rel (0) target = $region45
    $region44: #{lstm_multiclass_forward.1} parent=1 // pred_region
      _
    $region45: #{lstm_multiclass_forward.1} parent=1 // pred_fallthru
      _
    %v42 = vld [vmem:[%s3] sm:$0xf]
    %v43 = vld [vmem:[%s3 + $0x4] sm:$0xf]
    %v44 = vld [vmem:[%s4] sm:$0xf]
    %v45 = vld [vmem:[%s4 + $0x4] sm:$0xf]
    %v46 = vld [vmem:[%s4 + $0x8] sm:$0xf]
    %v47 = vld [vmem:[%s4 + $0xc] sm:$0xf]
    %v48 = vld [vmem:[%s5] sm:$0x1]
    %v49 = vld [vmem:[%s0] sm:$0xf]
    %v50 = vld [vmem:[%s0 + $0x4] sm:$0xf]
    %v52 = vlaneseq
    %v53 = vshrl.u32 %v52, 7
    %v54 = vsub.s32 0, %v53
    %v55 = vrot.slane %v48, %v54
    %v59 = vunpack.c.l.b16 %v49
    %v60 = vunpack.c.l.b16 %v50
    %v61 = vpack.c.b16 %v60, %v59
    %v64 = vunpack.c.l.b16 %v42
    %v65 = vunpack.c.l.b16 %v43
    %v66 = vpack.c.b16 %v65, %v64
    %vm68 = vcmask 130048
    %v70 = vsel %vm68, %v61, 0
    %72 = vmatprep.subr.bf16.mxu0 0
    %73 = vmatpush1.bf16.msra.mxu0 %v66
    %74 = vmatprep.subr.bf16.mxu0 0
    %75 = vmatpush1.bf16.msra.mxu0 0
    %76 = vmatprep.subr.bf16.mxu0 0
    %77 = vmatpush1.bf16.msra.mxu0 0
    %78 = vmatprep.subr.bf16.mxu0 0
    %79 = vmatpush1.bf16.msra.mxu0 0
    %80 = vmatprep.subr.bf16.mxu0 0
    %81 = vmatpush1.bf16.msra.mxu0 0
    %82 = vmatprep.subr.bf16.mxu0 0
    %83 = vmatpush1.bf16.msra.mxu0 0
    %84 = vmatprep.subr.bf16.mxu0 0
    %85 = vmatpush1.bf16.msra.mxu0 0
    %86 = vmatprep.subr.bf16.mxu0 0
    %87 = vmatpush1.bf16.msra.mxu0 0
    %88 = vmatprep.subr.bf16.mxu0 0
    %89 = vmatpush1.bf16.msra.mxu0 0
    %90 = vmatprep.subr.bf16.mxu0 0
    %91 = vmatpush1.bf16.msra.mxu0 0
    %92 = vmatprep.subr.bf16.mxu0 0
    %93 = vmatpush1.bf16.msra.mxu0 0
    %94 = vmatprep.subr.bf16.mxu0 0
    %95 = vmatpush1.bf16.msra.mxu0 0
    %96 = vmatprep.subr.bf16.mxu0 0
    %97 = vmatpush1.bf16.msra.mxu0 0
    %98 = vmatprep.subr.bf16.mxu0 0
    %99 = vmatpush1.bf16.msra.mxu0 0
    %100 = vmatprep.subr.bf16.mxu0 0
    %101 = vmatpush1.bf16.msra.mxu0 0
    %102 = vmatprep.subr.bf16.mxu0 0
    %103 = vmatpush1.bf16.msra.mxu0 0
    %104 = vmatprep.mubr.bf16.mxu0 0
    %105 = vmatmul.mubr.bf16.gmra.mrb[0].mxu0 %v70
    %v106 = vpop.f32.mrb[0].mxu0
    %v107 = vadd.f32 %v55, %v106
    %v108 = vpop.f32.mrb[0].mxu0
    %v109 = vpop.f32.mrb[0].mxu0
    %v110 = vadd.f32 %v55, %v109
    %v111 = vpop.f32.mrb[0].mxu0
    %112 = vdwg.mxu0
    %v113 = vld [vmem:[%s1] sm:$0x3]
    %v114 = vld [vmem:[%s2] sm:$0x3]
    %v115 = vpack.c.bf16 %v113, %v113
    %v120 = vunpack.c.l.b16 %v44
    %v121 = vunpack.c.l.b16 %v45
    %v122 = vunpack.c.l.b16 %v46
    %v123 = vunpack.c.l.b16 %v47
    %v124 = vpack.c.b16 %v121, %v120
    %v125 = vpack.c.b16 %v123, %v122
    %vm128 = vcmask 261120
    %v130 = vsel %vm128, %v115, 0
    %132 = vmatprep.subr.bf16.mxu0 0
    %133 = vmatpush1.bf16.msra.mxu0 %v124
    %134 = vmatprep.subr.bf16.mxu0 0
    %135 = vmatpush1.bf16.msra.mxu0 %v125
    %136 = vmatprep.subr.bf16.mxu0 0
    %137 = vmatpush1.bf16.msra.mxu0 0
    %138 = vmatprep.subr.bf16.mxu0 0
    %139 = vmatpush1.bf16.msra.mxu0 0
    %140 = vmatprep.subr.bf16.mxu0 0
    %141 = vmatpush1.bf16.msra.mxu0 0
    %142 = vmatprep.subr.bf16.mxu0 0
    %143 = vmatpush1.bf16.msra.mxu0 0
    %144 = vmatprep.subr.bf16.mxu0 0
    %145 = vmatpush1.bf16.msra.mxu0 0
    %146 = vmatprep.subr.bf16.mxu0 0
    %147 = vmatpush1.bf16.msra.mxu0 0
    %148 = vmatprep.subr.bf16.mxu0 0
    %149 = vmatpush1.bf16.msra.mxu0 0
    %150 = vmatprep.subr.bf16.mxu0 0
    %151 = vmatpush1.bf16.msra.mxu0 0
    %152 = vmatprep.subr.bf16.mxu0 0
    %153 = vmatpush1.bf16.msra.mxu0 0
    %154 = vmatprep.subr.bf16.mxu0 0
    %155 = vmatpush1.bf16.msra.mxu0 0
    %156 = vmatprep.subr.bf16.mxu0 0
    %157 = vmatpush1.bf16.msra.mxu0 0
    %158 = vmatprep.subr.bf16.mxu0 0
    %159 = vmatpush1.bf16.msra.mxu0 0
    %160 = vmatprep.subr.bf16.mxu0 0
    %161 = vmatpush1.bf16.msra.mxu0 0
    %162 = vmatprep.subr.bf16.mxu0 0
    %163 = vmatpush1.bf16.msra.mxu0 0
    %164 = vmatprep.mubr.bf16.mxu0 0
    %165 = vmatmul.mubr.bf16.gmra.mrb[0].mxu0 %v130
    %v166 = vpop.f32.mrb[0].mxu0
    %v167 = vadd.f32 0.0, %v166
    %v168 = vpop.f32.mrb[0].mxu0
    %v169 = vpop.f32.mrb[0].mxu0
    %v170 = vpop.f32.mrb[0].mxu0
    %171 = vdwg.mxu0
    %v172 = vadd.f32 %v107, %v167
    %v173 = vxor.u32 %v172, 2147483648
    %v174 = vmul.f32 %v173, 1.442695
    %v175 = vpow.pop %v174
    %v176 = vadd.f32 %v175, 1.0
    %v177 = vrcp.pop %v176
    %v178 = vmul.f32 1.0, %v177
    %v179 = vtanh.pop %v172
    %181 = vrot.lane.b32.xlu0 %v114, 32
    %v182 = vpop.permute.xlu0 %181
    %v184 = vmul.f32 %v178, %v182
    %186 = vrot.lane.b32.xlu0 %v179, 32
    %v187 = vpop.permute.xlu0 %186
    %v189 = vmul.f32 %v178, %v187
    %191 = vrot.lane.b32.xlu0 %v189, 32
    %v192 = vpop.permute.xlu0 %191
    %v194 = vadd.f32 %v184, %v192
    %v195 = vtanh.pop %v194
    %197 = vrot.lane.b32.xlu0 %v195, 32
    %v198 = vpop.permute.xlu0 %197
    %v200 = vmul.f32 %v178, %v198
    %202 = vrot.lane.b32.xlu0 %v200, 64
    %v203 = vpop.permute.xlu0 %202
    %vm205 = vcmask 254976
    %206 = vst.msk [vmem:[#allocation2] sm:$0x3] %vm205, %v203
    %v207 = vpack.c.bf16 %v200, %v200
    %209 = vrot.lane.b32.xlu0 %v207, 64
    %v210 = vpop.permute.xlu0 %209
    %v212 = vsel %vm128, %v210, 0
    %214 = vmatprep.subr.bf16.mxu0 0
    %215 = vmatpush1.bf16.msra.mxu0 %v124
    %216 = vmatprep.subr.bf16.mxu0 0
    %217 = vmatpush1.bf16.msra.mxu0 %v125
    %218 = vmatprep.subr.bf16.mxu0 0
    %219 = vmatpush1.bf16.msra.mxu0 0
    %220 = vmatprep.subr.bf16.mxu0 0
    %221 = vmatpush1.bf16.msra.mxu0 0
    %222 = vmatprep.subr.bf16.mxu0 0
    %223 = vmatpush1.bf16.msra.mxu0 0
    %224 = vmatprep.subr.bf16.mxu0 0
    %225 = vmatpush1.bf16.msra.mxu0 0
    %226 = vmatprep.subr.bf16.mxu0 0
    %227 = vmatpush1.bf16.msra.mxu0 0
    %228 = vmatprep.subr.bf16.mxu0 0
    %229 = vmatpush1.bf16.msra.mxu0 0
    %230 = vmatprep.subr.bf16.mxu0 0
    %231 = vmatpush1.bf16.msra.mxu0 0
    %232 = vmatprep.subr.bf16.mxu0 0
    %233 = vmatpush1.bf16.msra.mxu0 0
    %234 = vmatprep.subr.bf16.mxu0 0
    %235 = vmatpush1.bf16.msra.mxu0 0
    %236 = vmatprep.subr.bf16.mxu0 0
    %237 = vmatpush1.bf16.msra.mxu0 0
    %238 = vmatprep.subr.bf16.mxu0 0
    %239 = vmatpush1.bf16.msra.mxu0 0
    %240 = vmatprep.subr.bf16.mxu0 0
    %241 = vmatpush1.bf16.msra.mxu0 0
    %242 = vmatprep.subr.bf16.mxu0 0
    %243 = vmatpush1.bf16.msra.mxu0 0
    %244 = vmatprep.subr.bf16.mxu0 0
    %245 = vmatpush1.bf16.msra.mxu0 0
    %246 = vmatprep.mubr.bf16.mxu0 0
    %247 = vmatmul.mubr.bf16.gmra.mrb[0].mxu0 %v212
    %v248 = vpop.f32.mrb[0].mxu0
    %v249 = vadd.f32 0.0, %v248
    %v250 = vpop.f32.mrb[0].mxu0
    %v251 = vpop.f32.mrb[0].mxu0
    %v252 = vpop.f32.mrb[0].mxu0
    %253 = vdwg.mxu0
    %v255 = vrot.slane %v249, 6
    %v257 = vadd.f32 %v107, %v255
    %v258 = vxor.u32 %v257, 2147483648
    %v259 = vmul.f32 %v258, 1.442695
    %v260 = vpow.pop %v259
    %v261 = vadd.f32 %v260, 1.0
    %v262 = vrcp.pop %v261
    %v263 = vmul.f32 1.0, %v262
    %v264 = vtanh.pop %v257
    %v266 = vrot.slane %v194, 6
    %v268 = vmul.f32 %v263, %v266
    %270 = vrot.lane.b32.xlu0 %v264, 32
    %v271 = vpop.permute.xlu0 %270
    %v273 = vmul.f32 %v263, %v271
    %275 = vrot.lane.b32.xlu0 %v273, 32
    %v276 = vpop.permute.xlu0 %275
    %v278 = vadd.f32 %v268, %v276
    %v279 = vtanh.pop %v278
    %281 = vrot.lane.b32.xlu0 %v279, 32
    %v282 = vpop.permute.xlu0 %281
    %v284 = vmul.f32 %v263, %v282
    %286 = vrot.lane.b32.xlu0 %v284, 64
    %v287 = vpop.permute.xlu0 %286
    %vm289 = vcmask 257026
    %290 = vst.msk [vmem:[#allocation2] sm:$0xc] %vm289, %v287
    %v291 = vpack.c.bf16 %v284, %v284
    %v293 = vrot.slane %v291, 1
    %294 = vrot.lane.b32.xlu0 %v293, 64
    %v295 = vpop.permute.xlu0 %294
    %v297 = vsel %vm128, %v295, 0
    %299 = vmatprep.subr.bf16.mxu0 0
    %300 = vmatpush1.bf16.msra.mxu0 %v124
    %301 = vmatprep.subr.bf16.mxu0 0
    %302 = vmatpush1.bf16.msra.mxu0 %v125
    %303 = vmatprep.subr.bf16.mxu0 0
    %304 = vmatpush1.bf16.msra.mxu0 0
    %305 = vmatprep.subr.bf16.mxu0 0
    %306 = vmatpush1.bf16.msra.mxu0 0
    %307 = vmatprep.subr.bf16.mxu0 0
    %308 = vmatpush1.bf16.msra.mxu0 0
    %309 = vmatprep.subr.bf16.mxu0 0
    %310 = vmatpush1.bf16.msra.mxu0 0
    %311 = vmatprep.subr.bf16.mxu0 0
    %312 = vmatpush1.bf16.msra.mxu0 0
    %313 = vmatprep.subr.bf16.mxu0 0
    %314 = vmatpush1.bf16.msra.mxu0 0
    %315 = vmatprep.subr.bf16.mxu0 0
    %316 = vmatpush1.bf16.msra.mxu0 0
    %317 = vmatprep.subr.bf16.mxu0 0
    %318 = vmatpush1.bf16.msra.mxu0 0
    %319 = vmatprep.subr.bf16.mxu0 0
    %320 = vmatpush1.bf16.msra.mxu0 0
    %321 = vmatprep.subr.bf16.mxu0 0
    %322 = vmatpush1.bf16.msra.mxu0 0
    %323 = vmatprep.subr.bf16.mxu0 0
    %324 = vmatpush1.bf16.msra.mxu0 0
    %325 = vmatprep.subr.bf16.mxu0 0
    %326 = vmatpush1.bf16.msra.mxu0 0
    %327 = vmatprep.subr.bf16.mxu0 0
    %328 = vmatpush1.bf16.msra.mxu0 0
    %329 = vmatprep.subr.bf16.mxu0 0
    %330 = vmatpush1.bf16.msra.mxu0 0
    %331 = vmatprep.mubr.bf16.mxu0 0
    %332 = vmatmul.mubr.bf16.gmra.mrb[0].mxu0 %v297
    %v333 = vpop.f32.mrb[0].mxu0
    %v334 = vadd.f32 0.0, %v333
    %v335 = vpop.f32.mrb[0].mxu0
    %v336 = vpop.f32.mrb[0].mxu0
    %v337 = vpop.f32.mrb[0].mxu0
    %338 = vdwg.mxu0
    %v340 = vrot.slane %v334, 4
    %v342 = vadd.f32 %v107, %v340
    %v343 = vxor.u32 %v342, 2147483648
    %v344 = vmul.f32 %v343, 1.442695
    %v345 = vpow.pop %v344
    %v346 = vadd.f32 %v345, 1.0
    %v347 = vrcp.pop %v346
    %v348 = vmul.f32 1.0, %v347
    %v349 = vtanh.pop %v342
    %v351 = vrot.slane %v278, 6
    %v353 = vmul.f32 %v348, %v351
    %355 = vrot.lane.b32.xlu0 %v349, 32
    %v356 = vpop.permute.xlu0 %355
    %v358 = vmul.f32 %v348, %v356
    %360 = vrot.lane.b32.xlu0 %v358, 32
    %v361 = vpop.permute.xlu0 %360
    %v363 = vadd.f32 %v353, %v361
    %v364 = vtanh.pop %v363
    %366 = vrot.lane.b32.xlu0 %v364, 32
    %v367 = vpop.permute.xlu0 %366
    %v369 = vmul.f32 %v348, %v367
    %371 = vrot.lane.b32.xlu0 %v369, 64
    %v372 = vpop.permute.xlu0 %371
    %vm374 = vcmask 259076
    %375 = vst.msk [vmem:[#allocation2] sm:$0x30] %vm374, %v372
    %v376 = vpack.c.bf16 %v369, %v369
    %v378 = vrot.slane %v376, 2
    %379 = vrot.lane.b32.xlu0 %v378, 64
    %v380 = vpop.permute.xlu0 %379
    %v382 = vsel %vm128, %v380, 0
    %384 = vmatprep.subr.bf16.mxu0 0
    %385 = vmatpush1.bf16.msra.mxu0 %v124
    %386 = vmatprep.subr.bf16.mxu0 0
    %387 = vmatpush1.bf16.msra.mxu0 %v125
    %388 = vmatprep.subr.bf16.mxu0 0
    %389 = vmatpush1.bf16.msra.mxu0 0
    %390 = vmatprep.subr.bf16.mxu0 0
    %391 = vmatpush1.bf16.msra.mxu0 0
    %392 = vmatprep.subr.bf16.mxu0 0
    %393 = vmatpush1.bf16.msra.mxu0 0
    %394 = vmatprep.subr.bf16.mxu0 0
    %395 = vmatpush1.bf16.msra.mxu0 0
    %396 = vmatprep.subr.bf16.mxu0 0
    %397 = vmatpush1.bf16.msra.mxu0 0
    %398 = vmatprep.subr.bf16.mxu0 0
    %399 = vmatpush1.bf16.msra.mxu0 0
    %400 = vmatprep.subr.bf16.mxu0 0
    %401 = vmatpush1.bf16.msra.mxu0 0
    %402 = vmatprep.subr.bf16.mxu0 0
    %403 = vmatpush1.bf16.msra.mxu0 0
    %404 = vmatprep.subr.bf16.mxu0 0
    %405 = vmatpush1.bf16.msra.mxu0 0
    %406 = vmatprep.subr.bf16.mxu0 0
    %407 = vmatpush1.bf16.msra.mxu0 0
    %408 = vmatprep.subr.bf16.mxu0 0
    %409 = vmatpush1.bf16.msra.mxu0 0
    %410 = vmatprep.subr.bf16.mxu0 0
    %411 = vmatpush1.bf16.msra.mxu0 0
    %412 = vmatprep.subr.bf16.mxu0 0
    %413 = vmatpush1.bf16.msra.mxu0 0
    %414 = vmatprep.subr.bf16.mxu0 0
    %415 = vmatpush1.bf16.msra.mxu0 0
    %416 = vmatprep.mubr.bf16.mxu0 0
    %417 = vmatmul.mubr.bf16.gmra.mrb[0].mxu0 %v382
    %v418 = vpop.f32.mrb[0].mxu0
    %v419 = vadd.f32 0.0, %v418
    %v420 = vpop.f32.mrb[0].mxu0
    %v421 = vpop.f32.mrb[0].mxu0
    %v422 = vpop.f32.mrb[0].mxu0
    %423 = vdwg.mxu0
    %v425 = vrot.slane %v419, 2
    %v427 = vadd.f32 %v107, %v425
    %v428 = vxor.u32 %v427, 2147483648
    %v429 = vmul.f32 %v428, 1.442695
    %v430 = vpow.pop %v429
    %v431 = vadd.f32 %v430, 1.0
    %v432 = vrcp.pop %v431
    %v433 = vmul.f32 1.0, %v432
    %v434 = vtanh.pop %v427
    %v436 = vrot.slane %v363, 6
    %v438 = vmul.f32 %v433, %v436
    %440 = vrot.lane.b32.xlu0 %v434, 32
    %v441 = vpop.permute.xlu0 %440
    %v443 = vmul.f32 %v433, %v441
    %445 = vrot.lane.b32.xlu0 %v443, 32
    %v446 = vpop.permute.xlu0 %445
    %v448 = vadd.f32 %v438, %v446
    %v449 = vtanh.pop %v448
    %451 = vrot.lane.b32.xlu0 %v449, 32
    %v452 = vpop.permute.xlu0 %451
    %v454 = vmul.f32 %v433, %v452
    %456 = vrot.lane.b32.xlu0 %v454, 64
    %v457 = vpop.permute.xlu0 %456
    %vm459 = vcmask 261126
    %460 = vst.msk [vmem:[#allocation2] sm:$0xc0] %vm459, %v457
    %v461 = vpack.c.bf16 %v454, %v454
    %v463 = vrot.slane %v461, 3
    %464 = vrot.lane.b32.xlu0 %v463, 64
    %v465 = vpop.permute.xlu0 %464
    %v467 = vsel %vm128, %v465, 0
    %469 = vmatprep.subr.bf16.mxu0 0
    %470 = vmatpush1.bf16.msra.mxu0 %v124
    %471 = vmatprep.subr.bf16.mxu0 0
    %472 = vmatpush1.bf16.msra.mxu0 %v125
    %473 = vmatprep.subr.bf16.mxu0 0
    %474 = vmatpush1.bf16.msra.mxu0 0
    %475 = vmatprep.subr.bf16.mxu0 0
    %476 = vmatpush1.bf16.msra.mxu0 0
    %477 = vmatprep.subr.bf16.mxu0 0
    %478 = vmatpush1.bf16.msra.mxu0 0
    %479 = vmatprep.subr.bf16.mxu0 0
    %480 = vmatpush1.bf16.msra.mxu0 0
    %481 = vmatprep.subr.bf16.mxu0 0
    %482 = vmatpush1.bf16.msra.mxu0 0
    %483 = vmatprep.subr.bf16.mxu0 0
    %484 = vmatpush1.bf16.msra.mxu0 0
    %485 = vmatprep.subr.bf16.mxu0 0
    %486 = vmatpush1.bf16.msra.mxu0 0
    %487 = vmatprep.subr.bf16.mxu0 0
    %488 = vmatpush1.bf16.msra.mxu0 0
    %489 = vmatprep.subr.bf16.mxu0 0
    %490 = vmatpush1.bf16.msra.mxu0 0
    %491 = vmatprep.subr.bf16.mxu0 0
    %492 = vmatpush1.bf16.msra.mxu0 0
    %493 = vmatprep.subr.bf16.mxu0 0
    %494 = vmatpush1.bf16.msra.mxu0 0
    %495 = vmatprep.subr.bf16.mxu0 0
    %496 = vmatpush1.bf16.msra.mxu0 0
    %497 = vmatprep.subr.bf16.mxu0 0
    %498 = vmatpush1.bf16.msra.mxu0 0
    %499 = vmatprep.subr.bf16.mxu0 0
    %500 = vmatpush1.bf16.msra.mxu0 0
    %501 = vmatprep.mubr.bf16.mxu0 0
    %502 = vmatmul.mubr.bf16.gmra.mrb[0].mxu0 %v467
    %v503 = vpop.f32.mrb[0].mxu0
    %v504 = vadd.f32 0.0, %v503
    %v505 = vpop.f32.mrb[0].mxu0
    %v506 = vpop.f32.mrb[0].mxu0
    %v507 = vpop.f32.mrb[0].mxu0
    %508 = vdwg.mxu0
    %v509 = vadd.f32 %v110, %v504
    %v510 = vxor.u32 %v509, 2147483648
    %v511 = vmul.f32 %v510, 1.442695
    %v512 = vpow.pop %v511
    %v513 = vadd.f32 %v512, 1.0
    %v514 = vrcp.pop %v513
    %v515 = vmul.f32 1.0, %v514
    %v516 = vtanh.pop %v509
    %v518 = vrot.slane %v448, 6
    %v520 = vmul.f32 %v515, %v518
    %522 = vrot.lane.b32.xlu0 %v516, 32
    %v523 = vpop.permute.xlu0 %522
    %v525 = vmul.f32 %v515, %v523
    %527 = vrot.lane.b32.xlu0 %v525, 32
    %v528 = vpop.permute.xlu0 %527
    %v530 = vadd.f32 %v520, %v528
    %v531 = vtanh.pop %v530
    %533 = vrot.lane.b32.xlu0 %v531, 32
    %v534 = vpop.permute.xlu0 %533
    %v536 = vmul.f32 %v515, %v534
    %538 = vrot.lane.b32.xlu0 %v536, 64
    %v539 = vpop.permute.xlu0 %538
    %541 = vst.msk [vmem:[#allocation2 + $0x8] sm:$0x3] %vm205, %v539
    %v542 = vpack.c.bf16 %v536, %v536
    %544 = vrot.lane.b32.xlu0 %v542, 64
    %v545 = vpop.permute.xlu0 %544
    %v547 = vsel %vm128, %v545, 0
    %549 = vmatprep.subr.bf16.mxu0 0
    %550 = vmatpush1.bf16.msra.mxu0 %v124
    %551 = vmatprep.subr.bf16.mxu0 0
    %552 = vmatpush1.bf16.msra.mxu0 %v125
    %553 = vmatprep.subr.bf16.mxu0 0
    %554 = vmatpush1.bf16.msra.mxu0 0
    %555 = vmatprep.subr.bf16.mxu0 0
    %556 = vmatpush1.bf16.msra.mxu0 0
    %557 = vmatprep.subr.bf16.mxu0 0
    %558 = vmatpush1.bf16.msra.mxu0 0
    %559 = vmatprep.subr.bf16.mxu0 0
    %560 = vmatpush1.bf16.msra.mxu0 0
    %561 = vmatprep.subr.bf16.mxu0 0
    %562 = vmatpush1.bf16.msra.mxu0 0
    %563 = vmatprep.subr.bf16.mxu0 0
    %564 = vmatpush1.bf16.msra.mxu0 0
    %565 = vmatprep.subr.bf16.mxu0 0
    %566 = vmatpush1.bf16.msra.mxu0 0
    %567 = vmatprep.subr.bf16.mxu0 0
    %568 = vmatpush1.bf16.msra.mxu0 0
    %569 = vmatprep.subr.bf16.mxu0 0
    %570 = vmatpush1.bf16.msra.mxu0 0
    %571 = vmatprep.subr.bf16.mxu0 0
    %572 = vmatpush1.bf16.msra.mxu0 0
    %573 = vmatprep.subr.bf16.mxu0 0
    %574 = vmatpush1.bf16.msra.mxu0 0
    %575 = vmatprep.subr.bf16.mxu0 0
    %576 = vmatpush1.bf16.msra.mxu0 0
    %577 = vmatprep.subr.bf16.mxu0 0
    %578 = vmatpush1.bf16.msra.mxu0 0
    %579 = vmatprep.subr.bf16.mxu0 0
    %580 = vmatpush1.bf16.msra.mxu0 0
    %581 = vmatprep.mubr.bf16.mxu0 0
    %582 = vmatmul.mubr.bf16.gmra.mrb[0].mxu0 %v547
    %v583 = vpop.f32.mrb[0].mxu0
    %v584 = vadd.f32 0.0, %v583
    %v585 = vpop.f32.mrb[0].mxu0
    %v586 = vpop.f32.mrb[0].mxu0
    %v587 = vpop.f32.mrb[0].mxu0
    %588 = vdwg.mxu0
    %v590 = vrot.slane %v584, 6
    %v592 = vadd.f32 %v110, %v590
    %v593 = vxor.u32 %v592, 2147483648
    %v594 = vmul.f32 %v593, 1.442695
    %v595 = vpow.pop %v594
    %v596 = vadd.f32 %v595, 1.0
    %v597 = vrcp.pop %v596
    %v598 = vmul.f32 1.0, %v597
    %v599 = vtanh.pop %v592
    %v601 = vrot.slane %v530, 6
    %v603 = vmul.f32 %v598, %v601
    %605 = vrot.lane.b32.xlu0 %v599, 32
    %v606 = vpop.permute.xlu0 %605
    %v608 = vmul.f32 %v598, %v606
    %610 = vrot.lane.b32.xlu0 %v608, 32
    %v611 = vpop.permute.xlu0 %610
    %v613 = vadd.f32 %v603, %v611
    %v614 = vtanh.pop %v613
    %616 = vrot.lane.b32.xlu0 %v614, 32
    %v617 = vpop.permute.xlu0 %616
    %v619 = vmul.f32 %v598, %v617
    %621 = vrot.lane.b32.xlu0 %v619, 64
    %v622 = vpop.permute.xlu0 %621
    %624 = vst.msk [vmem:[#allocation2 + $0x8] sm:$0xc] %vm289, %v622
    %v625 = vpack.c.bf16 %v619, %v619
    %v627 = vrot.slane %v625, 1
    %628 = vrot.lane.b32.xlu0 %v627, 64
    %v629 = vpop.permute.xlu0 %628
    %v631 = vsel %vm128, %v629, 0
    %633 = vmatprep.subr.bf16.mxu0 0
    %634 = vmatpush1.bf16.msra.mxu0 %v124
    %635 = vmatprep.subr.bf16.mxu0 0
    %636 = vmatpush1.bf16.msra.mxu0 %v125
    %637 = vmatprep.subr.bf16.mxu0 0
    %638 = vmatpush1.bf16.msra.mxu0 0
    %639 = vmatprep.subr.bf16.mxu0 0
    %640 = vmatpush1.bf16.msra.mxu0 0
    %641 = vmatprep.subr.bf16.mxu0 0
    %642 = vmatpush1.bf16.msra.mxu0 0
    %643 = vmatprep.subr.bf16.mxu0 0
    %644 = vmatpush1.bf16.msra.mxu0 0
    %645 = vmatprep.subr.bf16.mxu0 0
    %646 = vmatpush1.bf16.msra.mxu0 0
    %647 = vmatprep.subr.bf16.mxu0 0
    %648 = vmatpush1.bf16.msra.mxu0 0
    %649 = vmatprep.subr.bf16.mxu0 0
    %650 = vmatpush1.bf16.msra.mxu0 0
    %651 = vmatprep.subr.bf16.mxu0 0
    %652 = vmatpush1.bf16.msra.mxu0 0
    %653 = vmatprep.subr.bf16.mxu0 0
    %654 = vmatpush1.bf16.msra.mxu0 0
    %655 = vmatprep.subr.bf16.mxu0 0
    %656 = vmatpush1.bf16.msra.mxu0 0
    %657 = vmatprep.subr.bf16.mxu0 0
    %658 = vmatpush1.bf16.msra.mxu0 0
    %659 = vmatprep.subr.bf16.mxu0 0
    %660 = vmatpush1.bf16.msra.mxu0 0
    %661 = vmatprep.subr.bf16.mxu0 0
    %662 = vmatpush1.bf16.msra.mxu0 0
    %663 = vmatprep.subr.bf16.mxu0 0
    %664 = vmatpush1.bf16.msra.mxu0 0
    %665 = vmatprep.mubr.bf16.mxu0 0
    %666 = vmatmul.mubr.bf16.gmra.mrb[0].mxu0 %v631
    %v667 = vpop.f32.mrb[0].mxu0
    %v668 = vadd.f32 0.0, %v667
    %v669 = vpop.f32.mrb[0].mxu0
    %v670 = vpop.f32.mrb[0].mxu0
    %v671 = vpop.f32.mrb[0].mxu0
    %672 = vdwg.mxu0
    %v674 = vrot.slane %v668, 4
    %v676 = vadd.f32 %v110, %v674
    %v677 = vxor.u32 %v676, 2147483648
    %v678 = vmul.f32 %v677, 1.442695
    %v679 = vpow.pop %v678
    %v680 = vadd.f32 %v679, 1.0
    %v681 = vrcp.pop %v680
    %v682 = vmul.f32 1.0, %v681
    %v683 = vtanh.pop %v676
    %v685 = vrot.slane %v613, 6
    %v687 = vmul.f32 %v682, %v685
    %689 = vrot.lane.b32.xlu0 %v683, 32
    %v690 = vpop.permute.xlu0 %689
    %v692 = vmul.f32 %v682, %v690
    %694 = vrot.lane.b32.xlu0 %v692, 32
    %v695 = vpop.permute.xlu0 %694
    %v697 = vadd.f32 %v687, %v695
    %v698 = vtanh.pop %v697
    %700 = vrot.lane.b32.xlu0 %v698, 32
    %v701 = vpop.permute.xlu0 %700
    %v703 = vmul.f32 %v682, %v701
    %705 = vrot.lane.b32.xlu0 %v703, 64
    %v706 = vpop.permute.xlu0 %705
    %708 = vst.msk [vmem:[#allocation2 + $0x8] sm:$0x30] %vm374, %v706
    %v709 = vpack.c.bf16 %v703, %v703
    %v711 = vrot.slane %v709, 2
    %712 = vrot.lane.b32.xlu0 %v711, 64
    %v713 = vpop.permute.xlu0 %712
    %v715 = vsel %vm128, %v713, 0
    %717 = vmatprep.subr.bf16.mxu0 0
    %718 = vmatpush1.bf16.msra.mxu0 %v124
    %719 = vmatprep.subr.bf16.mxu0 0
    %720 = vmatpush1.bf16.msra.mxu0 %v125
    %721 = vmatprep.subr.bf16.mxu0 0
    %722 = vmatpush1.bf16.msra.mxu0 0
    %723 = vmatprep.subr.bf16.mxu0 0
    %724 = vmatpush1.bf16.msra.mxu0 0
    %725 = vmatprep.subr.bf16.mxu0 0
    %726 = vmatpush1.bf16.msra.mxu0 0
    %727 = vmatprep.subr.bf16.mxu0 0
    %728 = vmatpush1.bf16.msra.mxu0 0
    %729 = vmatprep.subr.bf16.mxu0 0
    %730 = vmatpush1.bf16.msra.mxu0 0
    %731 = vmatprep.subr.bf16.mxu0 0
    %732 = vmatpush1.bf16.msra.mxu0 0
    %733 = vmatprep.subr.bf16.mxu0 0
    %734 = vmatpush1.bf16.msra.mxu0 0
    %735 = vmatprep.subr.bf16.mxu0 0
    %736 = vmatpush1.bf16.msra.mxu0 0
    %737 = vmatprep.subr.bf16.mxu0 0
    %738 = vmatpush1.bf16.msra.mxu0 0
    %739 = vmatprep.subr.bf16.mxu0 0
    %740 = vmatpush1.bf16.msra.mxu0 0
    %741 = vmatprep.subr.bf16.mxu0 0
    %742 = vmatpush1.bf16.msra.mxu0 0
    %743 = vmatprep.subr.bf16.mxu0 0
    %744 = vmatpush1.bf16.msra.mxu0 0
    %745 = vmatprep.subr.bf16.mxu0 0
    %746 = vmatpush1.bf16.msra.mxu0 0
    %747 = vmatprep.subr.bf16.mxu0 0
    %748 = vmatpush1.bf16.msra.mxu0 0
    %749 = vmatprep.mubr.bf16.mxu0 0
    %750 = vmatmul.mubr.bf16.gmra.mrb[0].mxu0 %v715
    %v751 = vpop.f32.mrb[0].mxu0
    %v752 = vadd.f32 0.0, %v751
    %v753 = vpop.f32.mrb[0].mxu0
    %v754 = vpop.f32.mrb[0].mxu0
    %v755 = vpop.f32.mrb[0].mxu0
    %756 = vdwg.mxu0
    %v758 = vrot.slane %v752, 2
    %v760 = vadd.f32 %v110, %v758
    %v761 = vxor.u32 %v760, 2147483648
    %v762 = vmul.f32 %v761, 1.442695
    %v763 = vpow.pop %v762
    %v764 = vadd.f32 %v763, 1.0
    %v765 = vrcp.pop %v764
    %v766 = vmul.f32 1.0, %v765
    %v767 = vtanh.pop %v760
    %v769 = vrot.slane %v697, 6
    %v771 = vmul.f32 %v766, %v769
    %773 = vrot.lane.b32.xlu0 %v767, 32
    %v774 = vpop.permute.xlu0 %773
    %v776 = vmul.f32 %v766, %v774
    %778 = vrot.lane.b32.xlu0 %v776, 32
    %v779 = vpop.permute.xlu0 %778
    %v781 = vadd.f32 %v771, %v779
    %v782 = vtanh.pop %v781
    %784 = vrot.lane.b32.xlu0 %v782, 32
    %v785 = vpop.permute.xlu0 %784
    %v787 = vmul.f32 %v766, %v785
    %789 = vrot.lane.b32.xlu0 %v787, 64
    %v790 = vpop.permute.xlu0 %789
    %792 = vst.msk [vmem:[#allocation2 + $0x8] sm:$0xc0] %vm459, %v790
    %793 = vst.msk [vmem:[%s12 - $0x6] sm:$0xc0] %vm459, %v790
    %795 = vrot.lane.b32.xlu0 %v781, 96
    %v796 = vpop.permute.xlu0 %795
    %798 = vst.msk [vmem:[%s12 - $0x2] sm:$0xc0] %vm459, %v796
    %v799 = vld [vmem:[%s6] sm:$0xf]
    %v800 = vld [vmem:[%s6 + $0x4] sm:$0xf]
    %v801 = vld [vmem:[%s6 + $0x8] sm:$0xf]
    %v802 = vld [vmem:[%s6 + $0xc] sm:$0xf]
    %v803 = vld [vmem:[%s7] sm:$0xf]
    %v804 = vld [vmem:[%s7 + $0x4] sm:$0xf]
    %v805 = vld [vmem:[%s7 + $0x8] sm:$0xf]
    %v806 = vld [vmem:[%s7 + $0xc] sm:$0xf]
    %v807 = vld [vmem:[%s8] sm:$0x1]
    %v808 = vld [vmem:[#allocation2] sm:$0xff]
    %v809 = vld [vmem:[#allocation2 + $0x8] sm:$0xff]
    %v810 = vpack.c.bf16 %v809, %v808
    %v812 = vlaneseq
    %v813 = vshrl.u32 %v812, 7
    %v814 = vsub.s32 0, %v813
    %v815 = vrot.slane %v807, %v814
    %v821 = vunpack.c.l.b16 %v799
    %v822 = vunpack.c.l.b16 %v800
    %v823 = vunpack.c.l.b16 %v801
    %v824 = vunpack.c.l.b16 %v802
    %v825 = vpack.c.b16 %v822, %v821
    %v826 = vpack.c.b16 %v824, %v823
    %v830 = vsel %vm128, %v810, 0
    %832 = vmatprep.subr.bf16.mxu0 0
    %833 = vmatpush1.bf16.msra.mxu0 %v825
    %834 = vmatprep.subr.bf16.mxu0 0
    %835 = vmatpush1.bf16.msra.mxu0 %v826
    %836 = vmatprep.subr.bf16.mxu0 0
    %837 = vmatpush1.bf16.msra.mxu0 0
    %838 = vmatprep.subr.bf16.mxu0 0
    %839 = vmatpush1.bf16.msra.mxu0 0
    %840 = vmatprep.subr.bf16.mxu0 0
    %841 = vmatpush1.bf16.msra.mxu0 0
    %842 = vmatprep.subr.bf16.mxu0 0
    %843 = vmatpush1.bf16.msra.mxu0 0
    %844 = vmatprep.subr.bf16.mxu0 0
    %845 = vmatpush1.bf16.msra.mxu0 0
    %846 = vmatprep.subr.bf16.mxu0 0
    %847 = vmatpush1.bf16.msra.mxu0 0
    %848 = vmatprep.subr.bf16.mxu0 0
    %849 = vmatpush1.bf16.msra.mxu0 0
    %850 = vmatprep.subr.bf16.mxu0 0
    %851 = vmatpush1.bf16.msra.mxu0 0
    %852 = vmatprep.subr.bf16.mxu0 0
    %853 = vmatpush1.bf16.msra.mxu0 0
    %854 = vmatprep.subr.bf16.mxu0 0
    %855 = vmatpush1.bf16.msra.mxu0 0
    %856 = vmatprep.subr.bf16.mxu0 0
    %857 = vmatpush1.bf16.msra.mxu0 0
    %858 = vmatprep.subr.bf16.mxu0 0
    %859 = vmatpush1.bf16.msra.mxu0 0
    %860 = vmatprep.subr.bf16.mxu0 0
    %861 = vmatpush1.bf16.msra.mxu0 0
    %862 = vmatprep.subr.bf16.mxu0 0
    %863 = vmatpush1.bf16.msra.mxu0 0
    %864 = vmatprep.mubr.bf16.mxu0 0
    %865 = vmatmul.mubr.bf16.gmra.mrb[0].mxu0 %v830
    %v866 = vpop.f32.mrb[0].mxu0
    %v867 = vadd.f32 %v815, %v866
    %v868 = vpop.f32.mrb[0].mxu0
    %v869 = vpop.f32.mrb[0].mxu0
    %v870 = vadd.f32 %v815, %v869
    %v871 = vpop.f32.mrb[0].mxu0
    %872 = vdwg.mxu0
    %s873 = scalar_lea.vmem %s1, 2
    %v874 = vld [vmem:[%s873] sm:$0x3]
    %s875 = scalar_lea.vmem %s2, 2
    %v876 = vld [vmem:[%s875] sm:$0x3]
    %v877 = vpack.c.bf16 %v874, %v874
    %v882 = vunpack.c.l.b16 %v803
    %v883 = vunpack.c.l.b16 %v804
    %v884 = vunpack.c.l.b16 %v805
    %v885 = vunpack.c.l.b16 %v806
    %v886 = vpack.c.b16 %v883, %v882
    %v887 = vpack.c.b16 %v885, %v884
    %v891 = vsel %vm128, %v877, 0
    %893 = vmatprep.subr.bf16.mxu0 0
    %894 = vmatpush1.bf16.msra.mxu0 %v886
    %895 = vmatprep.subr.bf16.mxu0 0
    %896 = vmatpush1.bf16.msra.mxu0 %v887
    %897 = vmatprep.subr.bf16.mxu0 0
    %898 = vmatpush1.bf16.msra.mxu0 0
    %899 = vmatprep.subr.bf16.mxu0 0
    %900 = vmatpush1.bf16.msra.mxu0 0
    %901 = vmatprep.subr.bf16.mxu0 0
    %902 = vmatpush1.bf16.msra.mxu0 0
    %903 = vmatprep.subr.bf16.mxu0 0
    %904 = vmatpush1.bf16.msra.mxu0 0
    %905 = vmatprep.subr.bf16.mxu0 0
    %906 = vmatpush1.bf16.msra.mxu0 0
    %907 = vmatprep.subr.bf16.mxu0 0
    %908 = vmatpush1.bf16.msra.mxu0 0
    %909 = vmatprep.subr.bf16.mxu0 0
    %910 = vmatpush1.bf16.msra.mxu0 0
    %911 = vmatprep.subr.bf16.mxu0 0
    %912 = vmatpush1.bf16.msra.mxu0 0
    %913 = vmatprep.subr.bf16.mxu0 0
    %914 = vmatpush1.bf16.msra.mxu0 0
    %915 = vmatprep.subr.bf16.mxu0 0
    %916 = vmatpush1.bf16.msra.mxu0 0
    %917 = vmatprep.subr.bf16.mxu0 0
    %918 = vmatpush1.bf16.msra.mxu0 0
    %919 = vmatprep.subr.bf16.mxu0 0
    %920 = vmatpush1.bf16.msra.mxu0 0
    %921 = vmatprep.subr.bf16.mxu0 0
    %922 = vmatpush1.bf16.msra.mxu0 0
    %923 = vmatprep.subr.bf16.mxu0 0
    %924 = vmatpush1.bf16.msra.mxu0 0
    %925 = vmatprep.mubr.bf16.mxu0 0
    %926 = vmatmul.mubr.bf16.gmra.mrb[0].mxu0 %v891
    %v927 = vpop.f32.mrb[0].mxu0
    %v928 = vadd.f32 0.0, %v927
    %v929 = vpop.f32.mrb[0].mxu0
    %v930 = vpop.f32.mrb[0].mxu0
    %v931 = vpop.f32.mrb[0].mxu0
    %932 = vdwg.mxu0
    %v933 = vadd.f32 %v867, %v928
    %v934 = vxor.u32 %v933, 2147483648
    %v935 = vmul.f32 %v934, 1.442695
    %v936 = vpow.pop %v935
    %v937 = vadd.f32 %v936, 1.0
    %v938 = vrcp.pop %v937
    %v939 = vmul.f32 1.0, %v938
    %v940 = vtanh.pop %v933
    %942 = vrot.lane.b32.xlu0 %v876, 32
    %v943 = vpop.permute.xlu0 %942
    %v945 = vmul.f32 %v939, %v943
    %947 = vrot.lane.b32.xlu0 %v940, 32
    %v948 = vpop.permute.xlu0 %947
    %v950 = vmul.f32 %v939, %v948
    %952 = vrot.lane.b32.xlu0 %v950, 32
    %v953 = vpop.permute.xlu0 %952
    %v955 = vadd.f32 %v945, %v953
    %v956 = vtanh.pop %v955
    %958 = vrot.lane.b32.xlu0 %v956, 32
    %v959 = vpop.permute.xlu0 %958
    %v961 = vmul.f32 %v939, %v959
    %963 = vrot.lane.b32.xlu0 %v961, 64
    %v964 = vpop.permute.xlu0 %963
    %966 = vst.msk [vmem:[#allocation3] sm:$0x3] %vm205, %v964
    %v967 = vpack.c.bf16 %v961, %v961
    %969 = vrot.lane.b32.xlu0 %v967, 64
    %v970 = vpop.permute.xlu0 %969
    %v972 = vsel %vm128, %v970, 0
    %974 = vmatprep.subr.bf16.mxu0 0
    %975 = vmatpush1.bf16.msra.mxu0 %v886
    %976 = vmatprep.subr.bf16.mxu0 0
    %977 = vmatpush1.bf16.msra.mxu0 %v887
    %978 = vmatprep.subr.bf16.mxu0 0
    %979 = vmatpush1.bf16.msra.mxu0 0
    %980 = vmatprep.subr.bf16.mxu0 0
    %981 = vmatpush1.bf16.msra.mxu0 0
    %982 = vmatprep.subr.bf16.mxu0 0
    %983 = vmatpush1.bf16.msra.mxu0 0
    %984 = vmatprep.subr.bf16.mxu0 0
    %985 = vmatpush1.bf16.msra.mxu0 0
    %986 = vmatprep.subr.bf16.mxu0 0
    %987 = vmatpush1.bf16.msra.mxu0 0
    %988 = vmatprep.subr.bf16.mxu0 0
    %989 = vmatpush1.bf16.msra.mxu0 0
    %990 = vmatprep.subr.bf16.mxu0 0
    %991 = vmatpush1.bf16.msra.mxu0 0
    %992 = vmatprep.subr.bf16.mxu0 0
    %993 = vmatpush1.bf16.msra.mxu0 0
    %994 = vmatprep.subr.bf16.mxu0 0
    %995 = vmatpush1.bf16.msra.mxu0 0
    %996 = vmatprep.subr.bf16.mxu0 0
    %997 = vmatpush1.bf16.msra.mxu0 0
    %998 = vmatprep.subr.bf16.mxu0 0
    %999 = vmatpush1.bf16.msra.mxu0 0
    %1000 = vmatprep.subr.bf16.mxu0 0
    %1001 = vmatpush1.bf16.msra.mxu0 0
    %1002 = vmatprep.subr.bf16.mxu0 0
    %1003 = vmatpush1.bf16.msra.mxu0 0
    %1004 = vmatprep.subr.bf16.mxu0 0
    %1005 = vmatpush1.bf16.msra.mxu0 0
    %1006 = vmatprep.mubr.bf16.mxu0 0
    %1007 = vmatmul.mubr.bf16.gmra.mrb[0].mxu0 %v972
    %v1008 = vpop.f32.mrb[0].mxu0
    %v1009 = vadd.f32 0.0, %v1008
    %v1010 = vpop.f32.mrb[0].mxu0
    %v1011 = vpop.f32.mrb[0].mxu0
    %v1012 = vpop.f32.mrb[0].mxu0
    %1013 = vdwg.mxu0
    %v1015 = vrot.slane %v1009, 6
    %v1017 = vadd.f32 %v867, %v1015
    %v1018 = vxor.u32 %v1017, 2147483648
    %v1019 = vmul.f32 %v1018, 1.442695
    %v1020 = vpow.pop %v1019
    %v1021 = vadd.f32 %v1020, 1.0
    %v1022 = vrcp.pop %v1021
    %v1023 = vmul.f32 1.0, %v1022
    %v1024 = vtanh.pop %v1017
    %v1026 = vrot.slane %v955, 6
    %v1028 = vmul.f32 %v1023, %v1026
    %1030 = vrot.lane.b32.xlu0 %v1024, 32
    %v1031 = vpop.permute.xlu0 %1030
    %v1033 = vmul.f32 %v1023, %v1031
    %1035 = vrot.lane.b32.xlu0 %v1033, 32
    %v1036 = vpop.permute.xlu0 %1035
    %v1038 = vadd.f32 %v1028, %v1036
    %v1039 = vtanh.pop %v1038
    %1041 = vrot.lane.b32.xlu0 %v1039, 32
    %v1042 = vpop.permute.xlu0 %1041
    %v1044 = vmul.f32 %v1023, %v1042
    %1046 = vrot.lane.b32.xlu0 %v1044, 64
    %v1047 = vpop.permute.xlu0 %1046
    %1049 = vst.msk [vmem:[#allocation3] sm:$0xc] %vm289, %v1047
    %v1050 = vpack.c.bf16 %v1044, %v1044
    %v1052 = vrot.slane %v1050, 1
    %1053 = vrot.lane.b32.xlu0 %v1052, 64
    %v1054 = vpop.permute.xlu0 %1053
    %v1056 = vsel %vm128, %v1054, 0
    %1058 = vmatprep.subr.bf16.mxu0 0
    %1059 = vmatpush1.bf16.msra.mxu0 %v886
    %1060 = vmatprep.subr.bf16.mxu0 0
    %1061 = vmatpush1.bf16.msra.mxu0 %v887
    %1062 = vmatprep.subr.bf16.mxu0 0
    %1063 = vmatpush1.bf16.msra.mxu0 0
    %1064 = vmatprep.subr.bf16.mxu0 0
    %1065 = vmatpush1.bf16.msra.mxu0 0
    %1066 = vmatprep.subr.bf16.mxu0 0
    %1067 = vmatpush1.bf16.msra.mxu0 0
    %1068 = vmatprep.subr.bf16.mxu0 0
    %1069 = vmatpush1.bf16.msra.mxu0 0
    %1070 = vmatprep.subr.bf16.mxu0 0
    %1071 = vmatpush1.bf16.msra.mxu0 0
    %1072 = vmatprep.subr.bf16.mxu0 0
    %1073 = vmatpush1.bf16.msra.mxu0 0
    %1074 = vmatprep.subr.bf16.mxu0 0
    %1075 = vmatpush1.bf16.msra.mxu0 0
    %1076 = vmatprep.subr.bf16.mxu0 0
    %1077 = vmatpush1.bf16.msra.mxu0 0
    %1078 = vmatprep.subr.bf16.mxu0 0
    %1079 = vmatpush1.bf16.msra.mxu0 0
    %1080 = vmatprep.subr.bf16.mxu0 0
    %1081 = vmatpush1.bf16.msra.mxu0 0
    %1082 = vmatprep.subr.bf16.mxu0 0
    %1083 = vmatpush1.bf16.msra.mxu0 0
    %1084 = vmatprep.subr.bf16.mxu0 0
    %1085 = vmatpush1.bf16.msra.mxu0 0
    %1086 = vmatprep.subr.bf16.mxu0 0
    %1087 = vmatpush1.bf16.msra.mxu0 0
    %1088 = vmatprep.subr.bf16.mxu0 0
    %1089 = vmatpush1.bf16.msra.mxu0 0
    %1090 = vmatprep.mubr.bf16.mxu0 0
    %1091 = vmatmul.mubr.bf16.gmra.mrb[0].mxu0 %v1056
    %v1092 = vpop.f32.mrb[0].mxu0
    %v1093 = vadd.f32 0.0, %v1092
    %v1094 = vpop.f32.mrb[0].mxu0
    %v1095 = vpop.f32.mrb[0].mxu0
    %v1096 = vpop.f32.mrb[0].mxu0
    %1097 = vdwg.mxu0
    %v1099 = vrot.slane %v1093, 4
    %v1101 = vadd.f32 %v867, %v1099
    %v1102 = vxor.u32 %v1101, 2147483648
    %v1103 = vmul.f32 %v1102, 1.442695
    %v1104 = vpow.pop %v1103
    %v1105 = vadd.f32 %v1104, 1.0
    %v1106 = vrcp.pop %v1105
    %v1107 = vmul.f32 1.0, %v1106
    %v1108 = vtanh.pop %v1101
    %v1110 = vrot.slane %v1038, 6
    %v1112 = vmul.f32 %v1107, %v1110
    %1114 = vrot.lane.b32.xlu0 %v1108, 32
    %v1115 = vpop.permute.xlu0 %1114
    %v1117 = vmul.f32 %v1107, %v1115
    %1119 = vrot.lane.b32.xlu0 %v1117, 32
    %v1120 = vpop.permute.xlu0 %1119
    %v1122 = vadd.f32 %v1112, %v1120
    %v1123 = vtanh.pop %v1122
    %1125 = vrot.lane.b32.xlu0 %v1123, 32
    %v1126 = vpop.permute.xlu0 %1125
    %v1128 = vmul.f32 %v1107, %v1126
    %1130 = vrot.lane.b32.xlu0 %v1128, 64
    %v1131 = vpop.permute.xlu0 %1130
    %1133 = vst.msk [vmem:[#allocation3] sm:$0x30] %vm374, %v1131
    %v1134 = vpack.c.bf16 %v1128, %v1128
    %v1136 = vrot.slane %v1134, 2
    %1137 = vrot.lane.b32.xlu0 %v1136, 64
    %v1138 = vpop.permute.xlu0 %1137
    %v1140 = vsel %vm128, %v1138, 0
    %1142 = vmatprep.subr.bf16.mxu0 0
    %1143 = vmatpush1.bf16.msra.mxu0 %v886
    %1144 = vmatprep.subr.bf16.mxu0 0
    %1145 = vmatpush1.bf16.msra.mxu0 %v887
    %1146 = vmatprep.subr.bf16.mxu0 0
    %1147 = vmatpush1.bf16.msra.mxu0 0
    %1148 = vmatprep.subr.bf16.mxu0 0
    %1149 = vmatpush1.bf16.msra.mxu0 0
    %1150 = vmatprep.subr.bf16.mxu0 0
    %1151 = vmatpush1.bf16.msra.mxu0 0
    %1152 = vmatprep.subr.bf16.mxu0 0
    %1153 = vmatpush1.bf16.msra.mxu0 0
    %1154 = vmatprep.subr.bf16.mxu0 0
    %1155 = vmatpush1.bf16.msra.mxu0 0
    %1156 = vmatprep.subr.bf16.mxu0 0
    %1157 = vmatpush1.bf16.msra.mxu0 0
    %1158 = vmatprep.subr.bf16.mxu0 0
    %1159 = vmatpush1.bf16.msra.mxu0 0
    %1160 = vmatprep.subr.bf16.mxu0 0
    %1161 = vmatpush1.bf16.msra.mxu0 0
    %1162 = vmatprep.subr.bf16.mxu0 0
    %1163 = vmatpush1.bf16.msra.mxu0 0
    %1164 = vmatprep.subr.bf16.mxu0 0
    %1165 = vmatpush1.bf16.msra.mxu0 0
    %1166 = vmatprep.subr.bf16.mxu0 0
    %1167 = vmatpush1.bf16.msra.mxu0 0
    %1168 = vmatprep.subr.bf16.mxu0 0
    %1169 = vmatpush1.bf16.msra.mxu0 0
    %1170 = vmatprep.subr.bf16.mxu0 0
    %1171 = vmatpush1.bf16.msra.mxu0 0
    %1172 = vmatprep.subr.bf16.mxu0 0
    %1173 = vmatpush1.bf16.msra.mxu0 0
    %1174 = vmatprep.mubr.bf16.mxu0 0
    %1175 = vmatmul.mubr.bf16.gmra.mrb[0].mxu0 %v1140
    %v1176 = vpop.f32.mrb[0].mxu0
    %v1177 = vadd.f32 0.0, %v1176
    %v1178 = vpop.f32.mrb[0].mxu0
    %v1179 = vpop.f32.mrb[0].mxu0
    %v1180 = vpop.f32.mrb[0].mxu0
    %1181 = vdwg.mxu0
    %v1183 = vrot.slane %v1177, 2
    %v1185 = vadd.f32 %v867, %v1183
    %v1186 = vxor.u32 %v1185, 2147483648
    %v1187 = vmul.f32 %v1186, 1.442695
    %v1188 = vpow.pop %v1187
    %v1189 = vadd.f32 %v1188, 1.0
    %v1190 = vrcp.pop %v1189
    %v1191 = vmul.f32 1.0, %v1190
    %v1192 = vtanh.pop %v1185
    %v1194 = vrot.slane %v1122, 6
    %v1196 = vmul.f32 %v1191, %v1194
    %1198 = vrot.lane.b32.xlu0 %v1192, 32
    %v1199 = vpop.permute.xlu0 %1198
    %v1201 = vmul.f32 %v1191, %v1199
    %1203 = vrot.lane.b32.xlu0 %v1201, 32
    %v1204 = vpop.permute.xlu0 %1203
    %v1206 = vadd.f32 %v1196, %v1204
    %v1207 = vtanh.pop %v1206
    %1209 = vrot.lane.b32.xlu0 %v1207, 32
    %v1210 = vpop.permute.xlu0 %1209
    %v1212 = vmul.f32 %v1191, %v1210
    %1214 = vrot.lane.b32.xlu0 %v1212, 64
    %v1215 = vpop.permute.xlu0 %1214
    %1217 = vst.msk [vmem:[#allocation3] sm:$0xc0] %vm459, %v1215
    %v1218 = vpack.c.bf16 %v1212, %v1212
    %v1220 = vrot.slane %v1218, 3
    %1221 = vrot.lane.b32.xlu0 %v1220, 64
    %v1222 = vpop.permute.xlu0 %1221
    %v1224 = vsel %vm128, %v1222, 0
    %1226 = vmatprep.subr.bf16.mxu0 0
    %1227 = vmatpush1.bf16.msra.mxu0 %v886
    %1228 = vmatprep.subr.bf16.mxu0 0
    %1229 = vmatpush1.bf16.msra.mxu0 %v887
    %1230 = vmatprep.subr.bf16.mxu0 0
    %1231 = vmatpush1.bf16.msra.mxu0 0
    %1232 = vmatprep.subr.bf16.mxu0 0
    %1233 = vmatpush1.bf16.msra.mxu0 0
    %1234 = vmatprep.subr.bf16.mxu0 0
    %1235 = vmatpush1.bf16.msra.mxu0 0
    %1236 = vmatprep.subr.bf16.mxu0 0
    %1237 = vmatpush1.bf16.msra.mxu0 0
    %1238 = vmatprep.subr.bf16.mxu0 0
    %1239 = vmatpush1.bf16.msra.mxu0 0
    %1240 = vmatprep.subr.bf16.mxu0 0
    %1241 = vmatpush1.bf16.msra.mxu0 0
    %1242 = vmatprep.subr.bf16.mxu0 0
    %1243 = vmatpush1.bf16.msra.mxu0 0
    %1244 = vmatprep.subr.bf16.mxu0 0
    %1245 = vmatpush1.bf16.msra.mxu0 0
    %1246 = vmatprep.subr.bf16.mxu0 0
    %1247 = vmatpush1.bf16.msra.mxu0 0
    %1248 = vmatprep.subr.bf16.mxu0 0
    %1249 = vmatpush1.bf16.msra.mxu0 0
    %1250 = vmatprep.subr.bf16.mxu0 0
    %1251 = vmatpush1.bf16.msra.mxu0 0
    %1252 = vmatprep.subr.bf16.mxu0 0
    %1253 = vmatpush1.bf16.msra.mxu0 0
    %1254 = vmatprep.subr.bf16.mxu0 0
    %1255 = vmatpush1.bf16.msra.mxu0 0
    %1256 = vmatprep.subr.bf16.mxu0 0
    %1257 = vmatpush1.bf16.msra.mxu0 0
    %1258 = vmatprep.mubr.bf16.mxu0 0
    %1259 = vmatmul.mubr.bf16.gmra.mrb[0].mxu0 %v1224
    %v1260 = vpop.f32.mrb[0].mxu0
    %v1261 = vadd.f32 0.0, %v1260
    %v1262 = vpop.f32.mrb[0].mxu0
    %v1263 = vpop.f32.mrb[0].mxu0
    %v1264 = vpop.f32.mrb[0].mxu0
    %1265 = vdwg.mxu0
    %v1266 = vadd.f32 %v870, %v1261
    %v1267 = vxor.u32 %v1266, 2147483648
    %v1268 = vmul.f32 %v1267, 1.442695
    %v1269 = vpow.pop %v1268
    %v1270 = vadd.f32 %v1269, 1.0
    %v1271 = vrcp.pop %v1270
    %v1272 = vmul.f32 1.0, %v1271
    %v1273 = vtanh.pop %v1266
    %v1275 = vrot.slane %v1206, 6
    %v1277 = vmul.f32 %v1272, %v1275
    %1279 = vrot.lane.b32.xlu0 %v1273, 32
    %v1280 = vpop.permute.xlu0 %1279
    %v1282 = vmul.f32 %v1272, %v1280
    %1284 = vrot.lane.b32.xlu0 %v1282, 32
    %v1285 = vpop.permute.xlu0 %1284
    %v1287 = vadd.f32 %v1277, %v1285
    %v1288 = vtanh.pop %v1287
    %1290 = vrot.lane.b32.xlu0 %v1288, 32
    %v1291 = vpop.permute.xlu0 %1290
    %v1293 = vmul.f32 %v1272, %v1291
    %1295 = vrot.lane.b32.xlu0 %v1293, 64
    %v1296 = vpop.permute.xlu0 %1295
    %1298 = vst.msk [vmem:[#allocation3 + $0x8] sm:$0x3] %vm205, %v1296
    %v1299 = vpack.c.bf16 %v1293, %v1293
    %1301 = vrot.lane.b32.xlu0 %v1299, 64
    %v1302 = vpop.permute.xlu0 %1301
    %v1304 = vsel %vm128, %v1302, 0
    %1306 = vmatprep.subr.bf16.mxu0 0
    %1307 = vmatpush1.bf16.msra.mxu0 %v886
    %1308 = vmatprep.subr.bf16.mxu0 0
    %1309 = vmatpush1.bf16.msra.mxu0 %v887
    %1310 = vmatprep.subr.bf16.mxu0 0
    %1311 = vmatpush1.bf16.msra.mxu0 0
    %1312 = vmatprep.subr.bf16.mxu0 0
    %1313 = vmatpush1.bf16.msra.mxu0 0
    %1314 = vmatprep.subr.bf16.mxu0 0
    %1315 = vmatpush1.bf16.msra.mxu0 0
    %1316 = vmatprep.subr.bf16.mxu0 0
    %1317 = vmatpush1.bf16.msra.mxu0 0
    %1318 = vmatprep.subr.bf16.mxu0 0
    %1319 = vmatpush1.bf16.msra.mxu0 0
    %1320 = vmatprep.subr.bf16.mxu0 0
    %1321 = vmatpush1.bf16.msra.mxu0 0
    %1322 = vmatprep.subr.bf16.mxu0 0
    %1323 = vmatpush1.bf16.msra.mxu0 0
    %1324 = vmatprep.subr.bf16.mxu0 0
    %1325 = vmatpush1.bf16.msra.mxu0 0
    %1326 = vmatprep.subr.bf16.mxu0 0
    %1327 = vmatpush1.bf16.msra.mxu0 0
    %1328 = vmatprep.subr.bf16.mxu0 0
    %1329 = vmatpush1.bf16.msra.mxu0 0
    %1330 = vmatprep.subr.bf16.mxu0 0
    %1331 = vmatpush1.bf16.msra.mxu0 0
    %1332 = vmatprep.subr.bf16.mxu0 0
    %1333 = vmatpush1.bf16.msra.mxu0 0
    %1334 = vmatprep.subr.bf16.mxu0 0
    %1335 = vmatpush1.bf16.msra.mxu0 0
    %1336 = vmatprep.subr.bf16.mxu0 0
    %1337 = vmatpush1.bf16.msra.mxu0 0
    %1338 = vmatprep.mubr.bf16.mxu0 0
    %1339 = vmatmul.mubr.bf16.gmra.mrb[0].mxu0 %v1304
    %v1340 = vpop.f32.mrb[0].mxu0
    %v1341 = vadd.f32 0.0, %v1340
    %v1342 = vpop.f32.mrb[0].mxu0
    %v1343 = vpop.f32.mrb[0].mxu0
    %v1344 = vpop.f32.mrb[0].mxu0
    %1345 = vdwg.mxu0
    %v1347 = vrot.slane %v1341, 6
    %v1349 = vadd.f32 %v870, %v1347
    %v1350 = vxor.u32 %v1349, 2147483648
    %v1351 = vmul.f32 %v1350, 1.442695
    %v1352 = vpow.pop %v1351
    %v1353 = vadd.f32 %v1352, 1.0
    %v1354 = vrcp.pop %v1353
    %v1355 = vmul.f32 1.0, %v1354
    %v1356 = vtanh.pop %v1349
    %v1358 = vrot.slane %v1287, 6
    %v1360 = vmul.f32 %v1355, %v1358
    %1362 = vrot.lane.b32.xlu0 %v1356, 32
    %v1363 = vpop.permute.xlu0 %1362
    %v1365 = vmul.f32 %v1355, %v1363
    %1367 = vrot.lane.b32.xlu0 %v1365, 32
    %v1368 = vpop.permute.xlu0 %1367
    %v1370 = vadd.f32 %v1360, %v1368
    %v1371 = vtanh.pop %v1370
    %1373 = vrot.lane.b32.xlu0 %v1371, 32
    %v1374 = vpop.permute.xlu0 %1373
    %v1376 = vmul.f32 %v1355, %v1374
    %1378 = vrot.lane.b32.xlu0 %v1376, 64
    %v1379 = vpop.permute.xlu0 %1378
    %1381 = vst.msk [vmem:[#allocation3 + $0x8] sm:$0xc] %vm289, %v1379
    %v1382 = vpack.c.bf16 %v1376, %v1376
    %v1384 = vrot.slane %v1382, 1
    %1385 = vrot.lane.b32.xlu0 %v1384, 64
    %v1386 = vpop.permute.xlu0 %1385
    %v1388 = vsel %vm128, %v1386, 0
    %1390 = vmatprep.subr.bf16.mxu0 0
    %1391 = vmatpush1.bf16.msra.mxu0 %v886
    %1392 = vmatprep.subr.bf16.mxu0 0
    %1393 = vmatpush1.bf16.msra.mxu0 %v887
    %1394 = vmatprep.subr.bf16.mxu0 0
    %1395 = vmatpush1.bf16.msra.mxu0 0
    %1396 = vmatprep.subr.bf16.mxu0 0
    %1397 = vmatpush1.bf16.msra.mxu0 0
    %1398 = vmatprep.subr.bf16.mxu0 0
    %1399 = vmatpush1.bf16.msra.mxu0 0
    %1400 = vmatprep.subr.bf16.mxu0 0
    %1401 = vmatpush1.bf16.msra.mxu0 0
    %1402 = vmatprep.subr.bf16.mxu0 0
    %1403 = vmatpush1.bf16.msra.mxu0 0
    %1404 = vmatprep.subr.bf16.mxu0 0
    %1405 = vmatpush1.bf16.msra.mxu0 0
    %1406 = vmatprep.subr.bf16.mxu0 0
    %1407 = vmatpush1.bf16.msra.mxu0 0
    %1408 = vmatprep.subr.bf16.mxu0 0
    %1409 = vmatpush1.bf16.msra.mxu0 0
    %1410 = vmatprep.subr.bf16.mxu0 0
    %1411 = vmatpush1.bf16.msra.mxu0 0
    %1412 = vmatprep.subr.bf16.mxu0 0
    %1413 = vmatpush1.bf16.msra.mxu0 0
    %1414 = vmatprep.subr.bf16.mxu0 0
    %1415 = vmatpush1.bf16.msra.mxu0 0
    %1416 = vmatprep.subr.bf16.mxu0 0
    %1417 = vmatpush1.bf16.msra.mxu0 0
    %1418 = vmatprep.subr.bf16.mxu0 0
    %1419 = vmatpush1.bf16.msra.mxu0 0
    %1420 = vmatprep.subr.bf16.mxu0 0
    %1421 = vmatpush1.bf16.msra.mxu0 0
    %1422 = vmatprep.mubr.bf16.mxu0 0
    %1423 = vmatmul.mubr.bf16.gmra.mrb[0].mxu0 %v1388
    %v1424 = vpop.f32.mrb[0].mxu0
    %v1425 = vadd.f32 0.0, %v1424
    %v1426 = vpop.f32.mrb[0].mxu0
    %v1427 = vpop.f32.mrb[0].mxu0
    %v1428 = vpop.f32.mrb[0].mxu0
    %1429 = vdwg.mxu0
    %v1431 = vrot.slane %v1425, 4
    %v1433 = vadd.f32 %v870, %v1431
    %v1434 = vxor.u32 %v1433, 2147483648
    %v1435 = vmul.f32 %v1434, 1.442695
    %v1436 = vpow.pop %v1435
    %v1437 = vadd.f32 %v1436, 1.0
    %v1438 = vrcp.pop %v1437
    %v1439 = vmul.f32 1.0, %v1438
    %v1440 = vtanh.pop %v1433
    %v1442 = vrot.slane %v1370, 6
    %v1444 = vmul.f32 %v1439, %v1442
    %1446 = vrot.lane.b32.xlu0 %v1440, 32
    %v1447 = vpop.permute.xlu0 %1446
    %v1449 = vmul.f32 %v1439, %v1447
    %1451 = vrot.lane.b32.xlu0 %v1449, 32
    %v1452 = vpop.permute.xlu0 %1451
    %v1454 = vadd.f32 %v1444, %v1452
    %v1455 = vtanh.pop %v1454
    %1457 = vrot.lane.b32.xlu0 %v1455, 32
    %v1458 = vpop.permute.xlu0 %1457
    %v1460 = vmul.f32 %v1439, %v1458
    %1462 = vrot.lane.b32.xlu0 %v1460, 64
    %v1463 = vpop.permute.xlu0 %1462
    %1465 = vst.msk [vmem:[#allocation3 + $0x8] sm:$0x30] %vm374, %v1463
    %v1466 = vpack.c.bf16 %v1460, %v1460
    %v1468 = vrot.slane %v1466, 2
    %1469 = vrot.lane.b32.xlu0 %v1468, 64
    %v1470 = vpop.permute.xlu0 %1469
    %v1472 = vsel %vm128, %v1470, 0
    %1474 = vmatprep.subr.bf16.mxu0 0
    %1475 = vmatpush1.bf16.msra.mxu0 %v886
    %1476 = vmatprep.subr.bf16.mxu0 0
    %1477 = vmatpush1.bf16.msra.mxu0 %v887
    %1478 = vmatprep.subr.bf16.mxu0 0
    %1479 = vmatpush1.bf16.msra.mxu0 0
    %1480 = vmatprep.subr.bf16.mxu0 0
    %1481 = vmatpush1.bf16.msra.mxu0 0
    %1482 = vmatprep.subr.bf16.mxu0 0
    %1483 = vmatpush1.bf16.msra.mxu0 0
    %1484 = vmatprep.subr.bf16.mxu0 0
    %1485 = vmatpush1.bf16.msra.mxu0 0
    %1486 = vmatprep.subr.bf16.mxu0 0
    %1487 = vmatpush1.bf16.msra.mxu0 0
    %1488 = vmatprep.subr.bf16.mxu0 0
    %1489 = vmatpush1.bf16.msra.mxu0 0
    %1490 = vmatprep.subr.bf16.mxu0 0
    %1491 = vmatpush1.bf16.msra.mxu0 0
    %1492 = vmatprep.subr.bf16.mxu0 0
    %1493 = vmatpush1.bf16.msra.mxu0 0
    %1494 = vmatprep.subr.bf16.mxu0 0
    %1495 = vmatpush1.bf16.msra.mxu0 0
    %1496 = vmatprep.subr.bf16.mxu0 0
    %1497 = vmatpush1.bf16.msra.mxu0 0
    %1498 = vmatprep.subr.bf16.mxu0 0
    %1499 = vmatpush1.bf16.msra.mxu0 0
    %1500 = vmatprep.subr.bf16.mxu0 0
    %1501 = vmatpush1.bf16.msra.mxu0 0
    %1502 = vmatprep.subr.bf16.mxu0 0
    %1503 = vmatpush1.bf16.msra.mxu0 0
    %1504 = vmatprep.subr.bf16.mxu0 0
    %1505 = vmatpush1.bf16.msra.mxu0 0
    %1506 = vmatprep.mubr.bf16.mxu0 0
    %1507 = vmatmul.mubr.bf16.gmra.mrb[0].mxu0 %v1472
    %v1508 = vpop.f32.mrb[0].mxu0
    %v1509 = vadd.f32 0.0, %v1508
    %v1510 = vpop.f32.mrb[0].mxu0
    %v1511 = vpop.f32.mrb[0].mxu0
    %v1512 = vpop.f32.mrb[0].mxu0
    %1513 = vdwg.mxu0
    %v1515 = vrot.slane %v1509, 2
    %v1517 = vadd.f32 %v870, %v1515
    %v1518 = vxor.u32 %v1517, 2147483648
    %v1519 = vmul.f32 %v1518, 1.442695
    %v1520 = vpow.pop %v1519
    %v1521 = vadd.f32 %v1520, 1.0
    %v1522 = vrcp.pop %v1521
    %v1523 = vmul.f32 1.0, %v1522
    %v1524 = vtanh.pop %v1517
    %v1526 = vrot.slane %v1454, 6
    %v1528 = vmul.f32 %v1523, %v1526
    %1530 = vrot.lane.b32.xlu0 %v1524, 32
    %v1531 = vpop.permute.xlu0 %1530
    %v1533 = vmul.f32 %v1523, %v1531
    %1535 = vrot.lane.b32.xlu0 %v1533, 32
    %v1536 = vpop.permute.xlu0 %1535
    %v1538 = vadd.f32 %v1528, %v1536
    %v1539 = vtanh.pop %v1538
    %1541 = vrot.lane.b32.xlu0 %v1539, 32
    %v1542 = vpop.permute.xlu0 %1541
    %v1544 = vmul.f32 %v1523, %v1542
    %1546 = vrot.lane.b32.xlu0 %v1544, 64
    %v1547 = vpop.permute.xlu0 %1546
    %1549 = vst.msk [vmem:[#allocation3 + $0x8] sm:$0xc0] %vm459, %v1547
    %1550 = vst.msk [vmem:[%s12 - $0x4] sm:$0xc0] %vm459, %v1547
    %1552 = vrot.lane.b32.xlu0 %v1538, 96
    %v1553 = vpop.permute.xlu0 %1552
    %1555 = vst.msk [vmem:[%s12] sm:$0xc0] %vm459, %v1553
    %v1556 = vld [vmem:[%s9] sm:$0xf]
    %v1557 = vld [vmem:[%s9 + $0x4] sm:$0xf]
    %v1558 = vld [vmem:[%s9 + $0x8] sm:$0xf]
    %v1559 = vld [vmem:[%s9 + $0xc] sm:$0xf]
    %v1560 = vld [vmem:[%s10] sm:$0x1]
    %v1561 = vld [vmem:[#allocation3] sm:$0xff]
    %v1562 = vld [vmem:[#allocation3 + $0x8] sm:$0xff]
    %v1563 = vpack.c.bf16 %v1562, %v1561
    %v1565 = vlaneseq
    %v1566 = vshrl.u32 %v1565, 7
    %v1567 = vsub.s32 0, %v1566
    %v1568 = vrot.slane %v1560, %v1567
    %v1574 = vunpack.c.l.b16 %v1556
    %v1575 = vunpack.c.l.b16 %v1557
    %v1576 = vunpack.c.l.b16 %v1558
    %v1577 = vunpack.c.l.b16 %v1559
    %v1578 = vpack.c.b16 %v1575, %v1574
    %v1579 = vpack.c.b16 %v1577, %v1576
    %v1583 = vsel %vm128, %v1563, 0
    %1585 = vmatprep.subr.bf16.mxu0 0
    %1586 = vmatpush1.bf16.msra.mxu0 %v1578
    %1587 = vmatprep.subr.bf16.mxu0 0
    %1588 = vmatpush1.bf16.msra.mxu0 %v1579
    %1589 = vmatprep.subr.bf16.mxu0 0
    %1590 = vmatpush1.bf16.msra.mxu0 0
    %1591 = vmatprep.subr.bf16.mxu0 0
    %1592 = vmatpush1.bf16.msra.mxu0 0
    %1593 = vmatprep.subr.bf16.mxu0 0
    %1594 = vmatpush1.bf16.msra.mxu0 0
    %1595 = vmatprep.subr.bf16.mxu0 0
    %1596 = vmatpush1.bf16.msra.mxu0 0
    %1597 = vmatprep.subr.bf16.mxu0 0
    %1598 = vmatpush1.bf16.msra.mxu0 0
    %1599 = vmatprep.subr.bf16.mxu0 0
    %1600 = vmatpush1.bf16.msra.mxu0 0
    %1601 = vmatprep.subr.bf16.mxu0 0
    %1602 = vmatpush1.bf16.msra.mxu0 0
    %1603 = vmatprep.subr.bf16.mxu0 0
    %1604 = vmatpush1.bf16.msra.mxu0 0
    %1605 = vmatprep.subr.bf16.mxu0 0
    %1606 = vmatpush1.bf16.msra.mxu0 0
    %1607 = vmatprep.subr.bf16.mxu0 0
    %1608 = vmatpush1.bf16.msra.mxu0 0
    %1609 = vmatprep.subr.bf16.mxu0 0
    %1610 = vmatpush1.bf16.msra.mxu0 0
    %1611 = vmatprep.subr.bf16.mxu0 0
    %1612 = vmatpush1.bf16.msra.mxu0 0
    %1613 = vmatprep.subr.bf16.mxu0 0
    %1614 = vmatpush1.bf16.msra.mxu0 0
    %1615 = vmatprep.subr.bf16.mxu0 0
    %1616 = vmatpush1.bf16.msra.mxu0 0
    %1617 = vmatprep.mubr.bf16.mxu0 0
    %1618 = vmatmul.mubr.bf16.gmra.mrb[0].mxu0 %v1583
    %v1619 = vpop.f32.mrb[0].mxu0
    %v1620 = vadd.f32 %v1568, %v1619
    %v1621 = vpop.f32.mrb[0].mxu0
    %v1622 = vpop.f32.mrb[0].mxu0
    %v1623 = vadd.f32 %v1568, %v1622
    %v1624 = vpop.f32.mrb[0].mxu0
    %1625 = vdwg.mxu0
    %1627 = vrot.lane.b32.xlu0 %v1620, 125
    %v1628 = vpop.permute.xlu0 %1627
    %v1630 = vrot.slane %v1620, 4
    %1631 = vrot.lane.b32.xlu0 %v1630, 126
    %v1632 = vpop.permute.xlu0 %1631
    %1635 = vrot.lane.b32.xlu0 %v1623, 127
    %v1636 = vpop.permute.xlu0 %1635
    %v1638 = vrot.slane %v1623, 4
    %vm1640 = vcmask 7168
    %v1641 = vsel %vm1640, %v1628, %v1632
    %vm1642 = vcmask 15360
    %v1643 = vsel %vm1642, %v1641, %v1636
    %vm1644 = vcmask 23552
    %v1645 = vsel %vm1644, %v1643, %v1638
    %vm1646 = vcmask 27650
    %1647 = vst.msk [vmem:[#allocation4 - $0x2] sm:$0xc] %vm1646, %v1645
    // Predicated region
    $region46: #{lstm_multiclass_forward.1} parent=1 // pred_check
      _
    $region47: #{lstm_multiclass_forward.1} parent=1 // pred_check_branch
      %1649 = sbr.rel (0) target = $region49
    $region48: #{lstm_multiclass_forward.1} parent=1 // pred_region
      %s1651 = ssub.s32 32, 32
      %1652 = vsyncadd [#allocation5], %s1651
      %s1654 = sshll.u32 [#allocation4], 4
      %s1655 = int_to_ptr.vmem [resolvable:$true] %s1654
      %1657 = dma.vmem_to_hbm [thread:$0]  %s1655, 32, %s11, [#allocation5]
    $region49: #{lstm_multiclass_forward.1} parent=1 // pred_fallthru
      _
    // Predicated region
    $region50: #{lstm_multiclass_forward.1} parent=1 // pred_check
      _
    $region51: #{lstm_multiclass_forward.1} parent=1 // pred_check_branch
      %1659 = sbr.rel (0) target = $region53
    $region52: #{lstm_multiclass_forward.1} parent=1 // pred_region
      _
    $region53: #{lstm_multiclass_forward.1} parent=1 // pred_fallthru
      _
    // Predicated region
    $region54: #{lstm_multiclass_forward.1} parent=1 // pred_check
      _
    $region55: #{lstm_multiclass_forward.1} parent=1 // pred_check_branch
      %1661 = sbr.rel (0) target = $region57
    $region56: #{lstm_multiclass_forward.1} parent=1 // pred_region
      %1662 = dma.done [#allocation5], 32
    $region57: #{lstm_multiclass_forward.1} parent=1 // pred_fallthru
      _
    // Predicated region
    $region58: #{lstm_multiclass_forward.1} parent=1 // pred_check
      _
    $region59: #{lstm_multiclass_forward.1} parent=1 // pred_check_branch
      %1664 = sbr.rel (0) target = $region61
    $region60: #{lstm_multiclass_forward.1} parent=1 // pred_region
      _
    $region61: #{lstm_multiclass_forward.1} parent=1 // pred_fallthru
      _
    %1665 = vsyncpa [#allocation5], 1

</llo_original>
